<compile_context>
chip_gen: v7x
topology: tpu7x:2x2x1
jax: 0.10.0
libtpu: 0.0.40
codegen_flags: <defaults>
</compile_context>

<pallas_src>
import jax
import jax.numpy as jnp
from jax.experimental import pallas as pl
from jax.experimental.pallas import tpu as pltpu

_HI = jax.lax.Precision.HIGHEST


def _eq3net_kernel(a_ref, g_ref, wb_ref, out_ref):
    """One row-group: rows are the flattened (i, j, k) of `bpt` batch elements."""
    _, bpt, nhid = out_ref.shape
    tile_rows = g_ref.shape[1]
    rpb = tile_rows // bpt                       # rows per batch element (= N^3)

    w2 = wb_ref[0:nhid, :]                       # (nhid, nhid)  packed constants
    b1 = wb_ref[nhid:nhid + 1, :]                # (1, nhid)
    b2 = wb_ref[nhid + 1:nhid + 2, :]            # (1, nhid)

    # Layer 1: per-row scale (lane-broadcast of the (rows, 1) adj column) + relu.
    h1 = jnp.maximum(a_ref[0] * g_ref[0] + b1, 0.0)            # (tile_rows, nhid)

    # Layer 2: one tall f32 MXU matmul + relu.
    h2 = jnp.dot(h1, w2, preferred_element_type=jnp.float32)   # (tile_rows, nhid)
    h2 = jnp.maximum(h2 + b2, 0.0)

    # Segmented sum over the (i, j, k) rows of each batch element in the group.
    parts = [jnp.sum(h2[b * rpb:(b + 1) * rpb, :], axis=0, keepdims=True)
             for b in range(bpt)]
    out_ref[0] = parts[0] if bpt == 1 else jnp.concatenate(parts, axis=0)


def _vmem_capacity_bytes():
    try:
        return int(pltpu.get_tpu_info().vmem_capacity_bytes)
    except Exception:
        return 64 << 20                          # v7x floor (smallest VMEM)


def _batches_per_group(batch, rows_per_batch, nhid, vmem_bytes):
    """Whole batch elements per grid step, sized so the ~4x f32 intermediate live
    set (h1, h2, G input, double-buffered copies) stays well inside VMEM."""
    budget = vmem_bytes // 16                    # per-copy activation budget
    bytes_per_batch = rows_per_batch * nhid * 4
    bpt = max(1, min(batch, budget // max(1, bytes_per_batch)))
    while batch % bpt:
        bpt -= 1
    # TODO(synk): intra-batch row tiling for the case where a single batch
    # element's (N^3, NHID) activation alone exceeds the budget (huge N/NHID).
    return bpt


def eq3net_forward(adj, feats, params):
    We, be, W1, b1, W2, b2, Wd, bd = params
    B, N, _ = adj.shape
    nhid = We.shape[1]
    n2 = N * N
    rpb = n2 * N                                 # rows per batch element: (i, j, k)

    # Encoder and layer-1 weight folded in XLA (no nonlinearity in between):
    #   G[b, k, :] = (feats[b, k] @ We + be) @ W1
    G = jnp.dot(jnp.dot(feats, We, precision=_HI) + be, W1, precision=_HI)

    # Pre-expand to the flattened (b, i, j, k) row space so the kernel does a
    # plain 2-D multiply with no in-kernel broadcast/reshape (~132 KB of HBM).
    a_rows = jnp.broadcast_to(adj.reshape(B, n2, 1), (B, n2, N))
    g_rows = jnp.broadcast_to(G[:, None, :, :], (B, n2, N, nhid))

    vmem_cap = _vmem_capacity_bytes()
    bpt = _batches_per_group(B, rpb, nhid, vmem_cap)
    num_groups = B // bpt
    tile_rows = bpt * rpb

    a_rows = a_rows.reshape(num_groups, tile_rows, 1).astype(jnp.float32)
    g_rows = g_rows.reshape(num_groups, tile_rows, nhid).astype(jnp.float32)
    wb = jnp.concatenate([W2, b1, b2], axis=0).astype(jnp.float32)   # one DMA

    sums = pl.pallas_call(
        _eq3net_kernel,
        out_shape=jax.ShapeDtypeStruct((num_groups, bpt, nhid), jnp.float32),
        grid=(num_groups,),
        in_specs=[
            pl.BlockSpec((1, tile_rows, 1), lambda t: (t, 0, 0)),      # adj rows
            pl.BlockSpec((1, tile_rows, nhid), lambda t: (t, 0, 0)),   # G rows
            pl.BlockSpec((nhid + 2, nhid), lambda t: (0, 0)),          # W2|b1|b2
        ],
        out_specs=pl.BlockSpec((1, bpt, nhid), lambda t: (t, 0, 0)),
        compiler_params=pltpu.CompilerParams(
            dimension_semantics=("parallel",),
            vmem_limit_bytes=max(32 << 20, min(vmem_cap * 3 // 4, 96 << 20))),
    )(a_rows, g_rows, wb)

    # Tiny, lane-sparse decoder (NHID -> NOUT) stays in plain XLA.
    return jnp.dot(sums.reshape(B, nhid), Wd, precision=_HI) + bd


def init_params(key, nin, nhid, nout):
    """Deterministic PyTorch-Linear-style init (uniform +- 1/sqrt(fan_in))."""
    ks = jax.random.split(key, 8)

    def lin(kw, kb, fan_in, fan_out):
        bound = 1.0 / float(fan_in) ** 0.5
        W = jax.random.uniform(kw, (fan_in, fan_out), jnp.float32, -bound, bound)
        b = jax.random.uniform(kb, (1, fan_out), jnp.float32, -bound, bound)
        return W, b

    We, be = lin(ks[0], ks[1], nin, nhid)
    W1, b1 = lin(ks[2], ks[3], nhid, nhid)
    W2, b2 = lin(ks[4], ks[5], nhid, nhid)
    Wd, bd = lin(ks[6], ks[7], nhid, nout)
    return (We, be, W1, b1, W2, b2, Wd, bd)


def ref_forward(adj, feats, params):
    """Pure-JAX full-precision reference mirroring the PyTorch forward."""
    We, be, W1, b1, W2, b2, Wd, bd = params
    fe = jnp.einsum('bnd,de->bne', feats, We, precision=_HI) + be     # enc
    x = jnp.einsum('bij,bkd->bijkd', adj, fe, precision=_HI)          # outer
    x = jnp.maximum(jnp.einsum('bijkd,de->bijke', x, W1, precision=_HI) + b1, 0.0)
    x = jnp.maximum(jnp.einsum('bijkd,de->bijke', x, W2, precision=_HI) + b2, 0.0)
    s = jnp.sum(x, axis=(1, 2, 3))                                    # (B, nhid)
    return jnp.einsum('bd,de->be', s, Wd, precision=_HI) + bd         # dec


if __name__ == "__main__":
    B, N, NIN, NHID, NOUT = 2, 8, 4, 32, 6

    key = jax.random.PRNGKey(0)
    k_adj, k_feats, k_params = jax.random.split(key, 3)
    adj = jax.random.normal(k_adj, (B, N, N), dtype=jnp.float32)
    feats = jax.random.normal(k_feats, (B, N, NIN), dtype=jnp.float32)
    params = init_params(k_params, NIN, NHID, NOUT)

    fwd = jax.jit(eq3net_forward)
    out = jax.block_until_ready(fwd(adj, feats, params))

    ref = ref_forward(adj, feats, params)
    assert out.shape == (B, NOUT), out.shape
    rel_err = float(jnp.linalg.norm(out - ref) / jnp.linalg.norm(ref))
    assert rel_err < 1e-2, rel_err   # f32 kernel vs f32 HIGHEST reference

    print("KERNEL_OK")
</pallas_src>

<mosaic_0001>
module attributes {stable_mosaic.version = 11 : i64} {
  func.func @_eq3net_kernel(%arg0: i32, %arg1: memref<1x1024x1xf32, #tpu.memory_space<vmem>>, %arg2: memref<1x1024x32xf32, #tpu.memory_space<vmem>>, %arg3: memref<34x32xf32, #tpu.memory_space<vmem>>, %arg4: memref<1x2x32xf32, #tpu.memory_space<vmem>>) attributes {dimension_semantics = [#tpu.dimension_semantics<parallel>], iteration_bounds = array<i64: 1>, scalar_prefetch = 0 : i64, scratch_operands = 0 : i64, tpu.core_type = #tpu.core_type<tc>, window_params = [{transform_indices = @transform_0, window_bounds = array<i64: 1, 1024, 1>}, {transform_indices = @transform_1, window_bounds = array<i64: 1, 1024, 32>}, {pipeline_mode = #tpu.pipeline_mode<synchronous>, transform_indices = @transform_2, window_bounds = array<i64: 34, 32>}, {transform_indices = @transform_3, window_bounds = array<i64: 1, 2, 32>}]} {
    %c0 = arith.constant 0 : index
    %c0_0 = arith.constant 0 : index
    %0 = vector.load %arg3[%c0, %c0_0] : memref<34x32xf32, #tpu.memory_space<vmem>>, vector<32x32xf32>
    %c32 = arith.constant 32 : index
    %c0_1 = arith.constant 0 : index
    %1 = vector.load %arg3[%c32, %c0_1] : memref<34x32xf32, #tpu.memory_space<vmem>>, vector<1x32xf32>
    %c33 = arith.constant 33 : index
    %c0_2 = arith.constant 0 : index
    %2 = vector.load %arg3[%c33, %c0_2] : memref<34x32xf32, #tpu.memory_space<vmem>>, vector<1x32xf32>
    %c0_3 = arith.constant 0 : index
    %c0_4 = arith.constant 0 : index
    %c0_5 = arith.constant 0 : index
    %3 = vector.load %arg1[%c0_3, %c0_4, %c0_5] : memref<1x1024x1xf32, #tpu.memory_space<vmem>>, vector<1x1024x1xf32>
    %4 = vector.shape_cast %3 : vector<1x1024x1xf32> to vector<1024x1xf32>
    %c0_6 = arith.constant 0 : index
    %c0_7 = arith.constant 0 : index
    %c0_8 = arith.constant 0 : index
    %5 = vector.load %arg2[%c0_6, %c0_7, %c0_8] : memref<1x1024x32xf32, #tpu.memory_space<vmem>>, vector<1x1024x32xf32>
    %6 = vector.shape_cast %5 : vector<1x1024x32xf32> to vector<1024x32xf32>
    %7 = vector.broadcast %4 : vector<1024x1xf32> to vector<1024x32xf32>
    %8 = arith.mulf %7, %6 : vector<1024x32xf32>
    %9 = vector.broadcast %1 : vector<1x32xf32> to vector<1024x32xf32>
    %10 = arith.addf %8, %9 : vector<1024x32xf32>
    %cst = arith.constant 0.000000e+00 : f32
    %11 = vector.broadcast %cst : f32 to vector<1024x32xf32>
    %12 = arith.maximumf %10, %11 : vector<1024x32xf32>
    %cst_9 = arith.constant dense<0.000000e+00> : vector<1024x32xf32>
    %13 = tpu.matmul %12, %0, %cst_9 {dimension_numbers = #tpu.dot_dimension_numbers<[1], [0], [0], [1], [0, 0, 1, 1], [], []>} : vector<1024x32xf32>, vector<32x32xf32>, vector<1024x32xf32> -> vector<1024x32xf32>
    %14 = vector.broadcast %2 : vector<1x32xf32> to vector<1024x32xf32>
    %15 = arith.addf %13, %14 : vector<1024x32xf32>
    %cst_10 = arith.constant 0.000000e+00 : f32
    %16 = vector.broadcast %cst_10 : f32 to vector<1024x32xf32>
    %17 = arith.maximumf %15, %16 : vector<1024x32xf32>
    %18 = vector.extract_strided_slice %17 {offsets = [0, 0], sizes = [512, 32], strides = [1, 1]} : vector<1024x32xf32> to vector<512x32xf32>
    %cst_11 = arith.constant dense<0.000000e+00> : vector<32xf32>
    %19 = vector.multi_reduction <add>, %18, %cst_11 [0] : vector<512x32xf32> to vector<32xf32>
    %20 = vector.shape_cast %19 : vector<32xf32> to vector<1x32xf32>
    %21 = vector.extract_strided_slice %17 {offsets = [512, 0], sizes = [512, 32], strides = [1, 1]} : vector<1024x32xf32> to vector<512x32xf32>
    %cst_12 = arith.constant dense<0.000000e+00> : vector<32xf32>
    %22 = vector.multi_reduction <add>, %21, %cst_12 [0] : vector<512x32xf32> to vector<32xf32>
    %23 = vector.shape_cast %22 : vector<32xf32> to vector<1x32xf32>
    %24 = tpu.concatenate %20, %23 in 0 : vector<1x32xf32>, vector<1x32xf32> -> vector<2x32xf32>
    %c0_13 = arith.constant 0 : index
    %c0_14 = arith.constant 0 : index
    %c0_15 = arith.constant 0 : index
    %25 = vector.load %arg4[%c0_13, %c0_14, %c0_15] : memref<1x2x32xf32, #tpu.memory_space<vmem>>, vector<1x2x32xf32>
    %26 = vector.shape_cast %25 : vector<1x2x32xf32> to vector<2x32xf32>
    %27 = vector.shape_cast %24 : vector<2x32xf32> to vector<1x2x32xf32>
    tpu.vector_store %arg4[%c0_13, %c0_14, %c0_15], %27 {strides = array<i32>} : memref<1x2x32xf32, #tpu.memory_space<vmem>>, vector<1x2x32xf32>,
    return
  }
  func.func @transform_0(%arg0: i32) -> (i32, i32, i32) {
    %c0_i32 = arith.constant 0 : i32
    %c0_i32_0 = arith.constant 0 : i32
    %c0_i32_1 = arith.constant 0 : i32
    return %arg0, %c0_i32, %c0_i32_0 : i32, i32, i32
  }
  func.func @transform_1(%arg0: i32) -> (i32, i32, i32) {
    %c0_i32 = arith.constant 0 : i32
    %c0_i32_0 = arith.constant 0 : i32
    %c0_i32_1 = arith.constant 0 : i32
    return %arg0, %c0_i32, %c0_i32_0 : i32, i32, i32
  }
  func.func @transform_2(%arg0: i32) -> (i32, i32) {
    %c0_i32 = arith.constant 0 : i32
    %c0_i32_0 = arith.constant 0 : i32
    %c0_i32_1 = arith.constant 0 : i32
    return %c0_i32, %c0_i32_0 : i32, i32
  }
  func.func @transform_3(%arg0: i32) -> (i32, i32, i32) {
    %c0_i32 = arith.constant 0 : i32
    %c0_i32_0 = arith.constant 0 : i32
    %c0_i32_1 = arith.constant 0 : i32
    return %arg0, %c0_i32, %c0_i32_0 : i32, i32, i32
  }
}

</mosaic_0001>

<llo_original>
// kernel: eq3net_forward.1
$region0: #{eq3net_forward.1}
  #allocation0 [shape = 'u32[]', space=smem, size = 0x4, offset = 0x4, fixed_abs, tag = 'smem constant byte address 0x4 - core index']
  #allocation1 [shape = 'u32[144,128]{1,0:T(1,128)}', space=vmem, size = 0x12000, scoped, tag = 'internal scratch']
  %s0 = inlined_call_operand.vmem [shape: f32[1,1024,1], index: 0, kind: input, shape index: {}]
  %s1 = inlined_call_operand.vmem [shape: f32[1,1024,32], index: 1, kind: input, shape index: {}]
  %s2 = inlined_call_operand.vmem [shape: f32[34,32], index: 2, kind: input, shape index: {}]
  %s3 = inlined_call_operand.vmem [shape: f32[1,2,32], index: 3, kind: output, shape index: {}]
  %s4 = sld [smem:[#allocation0]]
  $region22: #{eq3net_forward.1} parent=0
    _
  %s6 = ssub.s32 1, %s4
  %s7 = scalar_select 0, %s6, %s4
  // Predicated region
  $region2: #{eq3net_forward.1} parent=0 // pred_check
    _
  $region3: #{eq3net_forward.1} parent=0 // pred_check_branch
    %9 = sbr.rel (0) target = $region5
  $region4: #{eq3net_forward.1} parent=0 // pred_region
    _
  $region5: #{eq3net_forward.1} parent=0 // pred_fallthru
    _
  // Predicated region
  $region6: #{eq3net_forward.1} parent=0 // pred_check
    _
  $region7: #{eq3net_forward.1} parent=0 // pred_check_branch
    %11 = sbr.rel (0) target = $region9
  $region8: #{eq3net_forward.1} parent=0 // pred_region
    _
  $region9: #{eq3net_forward.1} parent=0 // pred_fallthru
    _
  // Predicated region
  $region10: #{eq3net_forward.1} parent=0 // pred_check
    _
  $region11: #{eq3net_forward.1} parent=0 // pred_check_branch
    %13 = sbr.rel (0) target = $region13
  $region12: #{eq3net_forward.1} parent=0 // pred_region
    _
  $region13: #{eq3net_forward.1} parent=0 // pred_fallthru
    _
  %v14 = vld [vmem:[%s2] sm:$0xff]
  %v15 = vld [vmem:[%s2 + $0x8] sm:$0xff]
  %v16 = vld [vmem:[%s2 + $0x10] sm:$0xff]
  %v17 = vld [vmem:[%s2 + $0x18] sm:$0xff]
  %v18 = vld [vmem:[%s2 + $0x20] sm:$0x1]
  %v19 = vld [vmem:[%s2 + $0x21] sm:$0x1]
  %v20 = vld [vmem:[%s0] sm:$0xff]
  %v21 = vld [vmem:[%s0 + $0x8] sm:$0xff]
  %v22 = vld [vmem:[%s0 + $0x10] sm:$0xff]
  %v23 = vld [vmem:[%s0 + $0x18] sm:$0xff]
  %v24 = vld [vmem:[%s0 + $0x20] sm:$0xff]
  %v25 = vld [vmem:[%s0 + $0x28] sm:$0xff]
  %v26 = vld [vmem:[%s0 + $0x30] sm:$0xff]
  %v27 = vld [vmem:[%s0 + $0x38] sm:$0xff]
  %v28 = vld [vmem:[%s0 + $0x40] sm:$0xff]
  %v29 = vld [vmem:[%s0 + $0x48] sm:$0xff]
  %v30 = vld [vmem:[%s0 + $0x50] sm:$0xff]
  %v31 = vld [vmem:[%s0 + $0x58] sm:$0xff]
  %v32 = vld [vmem:[%s0 + $0x60] sm:$0xff]
  %v33 = vld [vmem:[%s0 + $0x68] sm:$0xff]
  %v34 = vld [vmem:[%s0 + $0x70] sm:$0xff]
  %v35 = vld [vmem:[%s0 + $0x78] sm:$0xff]
  %v36 = vld [vmem:[%s0 + $0x80] sm:$0xff]
  %v37 = vld [vmem:[%s0 + $0x88] sm:$0xff]
  %v38 = vld [vmem:[%s0 + $0x90] sm:$0xff]
  %v39 = vld [vmem:[%s0 + $0x98] sm:$0xff]
  %v40 = vld [vmem:[%s0 + $0xa0] sm:$0xff]
  %v41 = vld [vmem:[%s0 + $0xa8] sm:$0xff]
  %v42 = vld [vmem:[%s0 + $0xb0] sm:$0xff]
  %v43 = vld [vmem:[%s0 + $0xb8] sm:$0xff]
  %v44 = vld [vmem:[%s0 + $0xc0] sm:$0xff]
  %v45 = vld [vmem:[%s0 + $0xc8] sm:$0xff]
  %v46 = vld [vmem:[%s0 + $0xd0] sm:$0xff]
  %v47 = vld [vmem:[%s0 + $0xd8] sm:$0xff]
  %v48 = vld [vmem:[%s0 + $0xe0] sm:$0xff]
  %v49 = vld [vmem:[%s0 + $0xe8] sm:$0xff]
  %v50 = vld [vmem:[%s0 + $0xf0] sm:$0xff]
  %v51 = vld [vmem:[%s0 + $0xf8] sm:$0xff]
  %v52 = vld [vmem:[%s0 + $0x100] sm:$0xff]
  %v53 = vld [vmem:[%s0 + $0x108] sm:$0xff]
  %v54 = vld [vmem:[%s0 + $0x110] sm:$0xff]
  %v55 = vld [vmem:[%s0 + $0x118] sm:$0xff]
  %v56 = vld [vmem:[%s0 + $0x120] sm:$0xff]
  %v57 = vld [vmem:[%s0 + $0x128] sm:$0xff]
  %v58 = vld [vmem:[%s0 + $0x130] sm:$0xff]
  %v59 = vld [vmem:[%s0 + $0x138] sm:$0xff]
  %v60 = vld [vmem:[%s0 + $0x140] sm:$0xff]
  %v61 = vld [vmem:[%s0 + $0x148] sm:$0xff]
  %v62 = vld [vmem:[%s0 + $0x150] sm:$0xff]
  %v63 = vld [vmem:[%s0 + $0x158] sm:$0xff]
  %v64 = vld [vmem:[%s0 + $0x160] sm:$0xff]
  %v65 = vld [vmem:[%s0 + $0x168] sm:$0xff]
  %v66 = vld [vmem:[%s0 + $0x170] sm:$0xff]
  %v67 = vld [vmem:[%s0 + $0x178] sm:$0xff]
  %v68 = vld [vmem:[%s0 + $0x180] sm:$0xff]
  %v69 = vld [vmem:[%s0 + $0x188] sm:$0xff]
  %v70 = vld [vmem:[%s0 + $0x190] sm:$0xff]
  %v71 = vld [vmem:[%s0 + $0x198] sm:$0xff]
  %v72 = vld [vmem:[%s0 + $0x1a0] sm:$0xff]
  %v73 = vld [vmem:[%s0 + $0x1a8] sm:$0xff]
  %v74 = vld [vmem:[%s0 + $0x1b0] sm:$0xff]
  %v75 = vld [vmem:[%s0 + $0x1b8] sm:$0xff]
  %v76 = vld [vmem:[%s0 + $0x1c0] sm:$0xff]
  %v77 = vld [vmem:[%s0 + $0x1c8] sm:$0xff]
  %v78 = vld [vmem:[%s0 + $0x1d0] sm:$0xff]
  %v79 = vld [vmem:[%s0 + $0x1d8] sm:$0xff]
  %v80 = vld [vmem:[%s0 + $0x1e0] sm:$0xff]
  %v81 = vld [vmem:[%s0 + $0x1e8] sm:$0xff]
  %v82 = vld [vmem:[%s0 + $0x1f0] sm:$0xff]
  %v83 = vld [vmem:[%s0 + $0x1f8] sm:$0xff]
  %v84 = vld [vmem:[%s0 + $0x200] sm:$0xff]
  %v85 = vld [vmem:[%s0 + $0x208] sm:$0xff]
  %v86 = vld [vmem:[%s0 + $0x210] sm:$0xff]
  %v87 = vld [vmem:[%s0 + $0x218] sm:$0xff]
  %v88 = vld [vmem:[%s0 + $0x220] sm:$0xff]
  %v89 = vld [vmem:[%s0 + $0x228] sm:$0xff]
  %v90 = vld [vmem:[%s0 + $0x230] sm:$0xff]
  %v91 = vld [vmem:[%s0 + $0x238] sm:$0xff]
  %v92 = vld [vmem:[%s0 + $0x240] sm:$0xff]
  %v93 = vld [vmem:[%s0 + $0x248] sm:$0xff]
  %v94 = vld [vmem:[%s0 + $0x250] sm:$0xff]
  %v95 = vld [vmem:[%s0 + $0x258] sm:$0xff]
  %v96 = vld [vmem:[%s0 + $0x260] sm:$0xff]
  %v97 = vld [vmem:[%s0 + $0x268] sm:$0xff]
  %v98 = vld [vmem:[%s0 + $0x270] sm:$0xff]
  %v99 = vld [vmem:[%s0 + $0x278] sm:$0xff]
  %v100 = vld [vmem:[%s0 + $0x280] sm:$0xff]
  %v101 = vld [vmem:[%s0 + $0x288] sm:$0xff]
  %v102 = vld [vmem:[%s0 + $0x290] sm:$0xff]
  %v103 = vld [vmem:[%s0 + $0x298] sm:$0xff]
  %v104 = vld [vmem:[%s0 + $0x2a0] sm:$0xff]
  %v105 = vld [vmem:[%s0 + $0x2a8] sm:$0xff]
  %v106 = vld [vmem:[%s0 + $0x2b0] sm:$0xff]
  %v107 = vld [vmem:[%s0 + $0x2b8] sm:$0xff]
  %v108 = vld [vmem:[%s0 + $0x2c0] sm:$0xff]
  %v109 = vld [vmem:[%s0 + $0x2c8] sm:$0xff]
  %v110 = vld [vmem:[%s0 + $0x2d0] sm:$0xff]
  %v111 = vld [vmem:[%s0 + $0x2d8] sm:$0xff]
  %v112 = vld [vmem:[%s0 + $0x2e0] sm:$0xff]
  %v113 = vld [vmem:[%s0 + $0x2e8] sm:$0xff]
  %v114 = vld [vmem:[%s0 + $0x2f0] sm:$0xff]
  %v115 = vld [vmem:[%s0 + $0x2f8] sm:$0xff]
  %v116 = vld [vmem:[%s0 + $0x300] sm:$0xff]
  %v117 = vld [vmem:[%s0 + $0x308] sm:$0xff]
  %v118 = vld [vmem:[%s0 + $0x310] sm:$0xff]
  %v119 = vld [vmem:[%s0 + $0x318] sm:$0xff]
  %v120 = vld [vmem:[%s0 + $0x320] sm:$0xff]
  %v121 = vld [vmem:[%s0 + $0x328] sm:$0xff]
  %v122 = vld [vmem:[%s0 + $0x330] sm:$0xff]
  %v123 = vld [vmem:[%s0 + $0x338] sm:$0xff]
  %v124 = vld [vmem:[%s0 + $0x340] sm:$0xff]
  %v125 = vld [vmem:[%s0 + $0x348] sm:$0xff]
  %v126 = vld [vmem:[%s0 + $0x350] sm:$0xff]
  %v127 = vld [vmem:[%s0 + $0x358] sm:$0xff]
  %v128 = vld [vmem:[%s0 + $0x360] sm:$0xff]
  %v129 = vld [vmem:[%s0 + $0x368] sm:$0xff]
  %v130 = vld [vmem:[%s0 + $0x370] sm:$0xff]
  %v131 = vld [vmem:[%s0 + $0x378] sm:$0xff]
  %v132 = vld [vmem:[%s0 + $0x380] sm:$0xff]
  %v133 = vld [vmem:[%s0 + $0x388] sm:$0xff]
  %v134 = vld [vmem:[%s0 + $0x390] sm:$0xff]
  %v135 = vld [vmem:[%s0 + $0x398] sm:$0xff]
  %v136 = vld [vmem:[%s0 + $0x3a0] sm:$0xff]
  %v137 = vld [vmem:[%s0 + $0x3a8] sm:$0xff]
  %v138 = vld [vmem:[%s0 + $0x3b0] sm:$0xff]
  %v139 = vld [vmem:[%s0 + $0x3b8] sm:$0xff]
  %v140 = vld [vmem:[%s0 + $0x3c0] sm:$0xff]
  %v141 = vld [vmem:[%s0 + $0x3c8] sm:$0xff]
  %v142 = vld [vmem:[%s0 + $0x3d0] sm:$0xff]
  %v143 = vld [vmem:[%s0 + $0x3d8] sm:$0xff]
  %v144 = vld [vmem:[%s0 + $0x3e0] sm:$0xff]
  %v145 = vld [vmem:[%s0 + $0x3e8] sm:$0xff]
  %v146 = vld [vmem:[%s0 + $0x3f0] sm:$0xff]
  %v147 = vld [vmem:[%s0 + $0x3f8] sm:$0xff]
  %v148 = vld [vmem:[%s1] sm:$0xff]
  %v149 = vld [vmem:[%s1 + $0x8] sm:$0xff]
  %v150 = vld [vmem:[%s1 + $0x10] sm:$0xff]
  %v151 = vld [vmem:[%s1 + $0x18] sm:$0xff]
  %v152 = vld [vmem:[%s1 + $0x20] sm:$0xff]
  %v153 = vld [vmem:[%s1 + $0x28] sm:$0xff]
  %v154 = vld [vmem:[%s1 + $0x30] sm:$0xff]
  %v155 = vld [vmem:[%s1 + $0x38] sm:$0xff]
  %v156 = vld [vmem:[%s1 + $0x40] sm:$0xff]
  %v157 = vld [vmem:[%s1 + $0x48] sm:$0xff]
  %v158 = vld [vmem:[%s1 + $0x50] sm:$0xff]
  %v159 = vld [vmem:[%s1 + $0x58] sm:$0xff]
  %v160 = vld [vmem:[%s1 + $0x60] sm:$0xff]
  %v161 = vld [vmem:[%s1 + $0x68] sm:$0xff]
  %v162 = vld [vmem:[%s1 + $0x70] sm:$0xff]
  %v163 = vld [vmem:[%s1 + $0x78] sm:$0xff]
  %v164 = vld [vmem:[%s1 + $0x80] sm:$0xff]
  %v165 = vld [vmem:[%s1 + $0x88] sm:$0xff]
  %v166 = vld [vmem:[%s1 + $0x90] sm:$0xff]
  %v167 = vld [vmem:[%s1 + $0x98] sm:$0xff]
  %v168 = vld [vmem:[%s1 + $0xa0] sm:$0xff]
  %v169 = vld [vmem:[%s1 + $0xa8] sm:$0xff]
  %v170 = vld [vmem:[%s1 + $0xb0] sm:$0xff]
  %v171 = vld [vmem:[%s1 + $0xb8] sm:$0xff]
  %v172 = vld [vmem:[%s1 + $0xc0] sm:$0xff]
  %v173 = vld [vmem:[%s1 + $0xc8] sm:$0xff]
  %v174 = vld [vmem:[%s1 + $0xd0] sm:$0xff]
  %v175 = vld [vmem:[%s1 + $0xd8] sm:$0xff]
  %v176 = vld [vmem:[%s1 + $0xe0] sm:$0xff]
  %v177 = vld [vmem:[%s1 + $0xe8] sm:$0xff]
  %v178 = vld [vmem:[%s1 + $0xf0] sm:$0xff]
  %v179 = vld [vmem:[%s1 + $0xf8] sm:$0xff]
  %v180 = vld [vmem:[%s1 + $0x100] sm:$0xff]
  %v181 = vld [vmem:[%s1 + $0x108] sm:$0xff]
  %v182 = vld [vmem:[%s1 + $0x110] sm:$0xff]
  %v183 = vld [vmem:[%s1 + $0x118] sm:$0xff]
  %v184 = vld [vmem:[%s1 + $0x120] sm:$0xff]
  %v185 = vld [vmem:[%s1 + $0x128] sm:$0xff]
  %v186 = vld [vmem:[%s1 + $0x130] sm:$0xff]
  %v187 = vld [vmem:[%s1 + $0x138] sm:$0xff]
  %v188 = vld [vmem:[%s1 + $0x140] sm:$0xff]
  %v189 = vld [vmem:[%s1 + $0x148] sm:$0xff]
  %v190 = vld [vmem:[%s1 + $0x150] sm:$0xff]
  %v191 = vld [vmem:[%s1 + $0x158] sm:$0xff]
  %v192 = vld [vmem:[%s1 + $0x160] sm:$0xff]
  %v193 = vld [vmem:[%s1 + $0x168] sm:$0xff]
  %v194 = vld [vmem:[%s1 + $0x170] sm:$0xff]
  %v195 = vld [vmem:[%s1 + $0x178] sm:$0xff]
  %v196 = vld [vmem:[%s1 + $0x180] sm:$0xff]
  %v197 = vld [vmem:[%s1 + $0x188] sm:$0xff]
  %v198 = vld [vmem:[%s1 + $0x190] sm:$0xff]
  %v199 = vld [vmem:[%s1 + $0x198] sm:$0xff]
  %v200 = vld [vmem:[%s1 + $0x1a0] sm:$0xff]
  %v201 = vld [vmem:[%s1 + $0x1a8] sm:$0xff]
  %v202 = vld [vmem:[%s1 + $0x1b0] sm:$0xff]
  %v203 = vld [vmem:[%s1 + $0x1b8] sm:$0xff]
  %v204 = vld [vmem:[%s1 + $0x1c0] sm:$0xff]
  %v205 = vld [vmem:[%s1 + $0x1c8] sm:$0xff]
  %v206 = vld [vmem:[%s1 + $0x1d0] sm:$0xff]
  %v207 = vld [vmem:[%s1 + $0x1d8] sm:$0xff]
  %v208 = vld [vmem:[%s1 + $0x1e0] sm:$0xff]
  %v209 = vld [vmem:[%s1 + $0x1e8] sm:$0xff]
  %v210 = vld [vmem:[%s1 + $0x1f0] sm:$0xff]
  %v211 = vld [vmem:[%s1 + $0x1f8] sm:$0xff]
  %v212 = vld [vmem:[%s1 + $0x200] sm:$0xff]
  %v213 = vld [vmem:[%s1 + $0x208] sm:$0xff]
  %v214 = vld [vmem:[%s1 + $0x210] sm:$0xff]
  %v215 = vld [vmem:[%s1 + $0x218] sm:$0xff]
  %v216 = vld [vmem:[%s1 + $0x220] sm:$0xff]
  %v217 = vld [vmem:[%s1 + $0x228] sm:$0xff]
  %v218 = vld [vmem:[%s1 + $0x230] sm:$0xff]
  %v219 = vld [vmem:[%s1 + $0x238] sm:$0xff]
  %v220 = vld [vmem:[%s1 + $0x240] sm:$0xff]
  %v221 = vld [vmem:[%s1 + $0x248] sm:$0xff]
  %v222 = vld [vmem:[%s1 + $0x250] sm:$0xff]
  %v223 = vld [vmem:[%s1 + $0x258] sm:$0xff]
  %v224 = vld [vmem:[%s1 + $0x260] sm:$0xff]
  %v225 = vld [vmem:[%s1 + $0x268] sm:$0xff]
  %v226 = vld [vmem:[%s1 + $0x270] sm:$0xff]
  %v227 = vld [vmem:[%s1 + $0x278] sm:$0xff]
  %v228 = vld [vmem:[%s1 + $0x280] sm:$0xff]
  %v229 = vld [vmem:[%s1 + $0x288] sm:$0xff]
  %v230 = vld [vmem:[%s1 + $0x290] sm:$0xff]
  %v231 = vld [vmem:[%s1 + $0x298] sm:$0xff]
  %v232 = vld [vmem:[%s1 + $0x2a0] sm:$0xff]
  %v233 = vld [vmem:[%s1 + $0x2a8] sm:$0xff]
  %v234 = vld [vmem:[%s1 + $0x2b0] sm:$0xff]
  %v235 = vld [vmem:[%s1 + $0x2b8] sm:$0xff]
  %v236 = vld [vmem:[%s1 + $0x2c0] sm:$0xff]
  %v237 = vld [vmem:[%s1 + $0x2c8] sm:$0xff]
  %v238 = vld [vmem:[%s1 + $0x2d0] sm:$0xff]
  %v239 = vld [vmem:[%s1 + $0x2d8] sm:$0xff]
  %v240 = vld [vmem:[%s1 + $0x2e0] sm:$0xff]
  %v241 = vld [vmem:[%s1 + $0x2e8] sm:$0xff]
  %v242 = vld [vmem:[%s1 + $0x2f0] sm:$0xff]
  %v243 = vld [vmem:[%s1 + $0x2f8] sm:$0xff]
  %v244 = vld [vmem:[%s1 + $0x300] sm:$0xff]
  %v245 = vld [vmem:[%s1 + $0x308] sm:$0xff]
  %v246 = vld [vmem:[%s1 + $0x310] sm:$0xff]
  %v247 = vld [vmem:[%s1 + $0x318] sm:$0xff]
  %v248 = vld [vmem:[%s1 + $0x320] sm:$0xff]
  %v249 = vld [vmem:[%s1 + $0x328] sm:$0xff]
  %v250 = vld [vmem:[%s1 + $0x330] sm:$0xff]
  %v251 = vld [vmem:[%s1 + $0x338] sm:$0xff]
  %v252 = vld [vmem:[%s1 + $0x340] sm:$0xff]
  %v253 = vld [vmem:[%s1 + $0x348] sm:$0xff]
  %v254 = vld [vmem:[%s1 + $0x350] sm:$0xff]
  %v255 = vld [vmem:[%s1 + $0x358] sm:$0xff]
  %v256 = vld [vmem:[%s1 + $0x360] sm:$0xff]
  %v257 = vld [vmem:[%s1 + $0x368] sm:$0xff]
  %v258 = vld [vmem:[%s1 + $0x370] sm:$0xff]
  %v259 = vld [vmem:[%s1 + $0x378] sm:$0xff]
  %v260 = vld [vmem:[%s1 + $0x380] sm:$0xff]
  %v261 = vld [vmem:[%s1 + $0x388] sm:$0xff]
  %v262 = vld [vmem:[%s1 + $0x390] sm:$0xff]
  %v263 = vld [vmem:[%s1 + $0x398] sm:$0xff]
  %v264 = vld [vmem:[%s1 + $0x3a0] sm:$0xff]
  %v265 = vld [vmem:[%s1 + $0x3a8] sm:$0xff]
  %v266 = vld [vmem:[%s1 + $0x3b0] sm:$0xff]
  %v267 = vld [vmem:[%s1 + $0x3b8] sm:$0xff]
  %v268 = vld [vmem:[%s1 + $0x3c0] sm:$0xff]
  %v269 = vld [vmem:[%s1 + $0x3c8] sm:$0xff]
  %v270 = vld [vmem:[%s1 + $0x3d0] sm:$0xff]
  %v271 = vld [vmem:[%s1 + $0x3d8] sm:$0xff]
  %v272 = vld [vmem:[%s1 + $0x3e0] sm:$0xff]
  %v273 = vld [vmem:[%s1 + $0x3e8] sm:$0xff]
  %v274 = vld [vmem:[%s1 + $0x3f0] sm:$0xff]
  %v275 = vld [vmem:[%s1 + $0x3f8] sm:$0xff]
  %277 = vset.pattern.permute.xlu0 0
  %278 = vperm.xlu0 %277, %v20
  %v279 = vpop.permute.xlu0 %278
  %282 = vset.pattern.permute.xlu0 0
  %283 = vperm.xlu0 %282, %v21
  %v284 = vpop.permute.xlu0 %283
  %287 = vset.pattern.permute.xlu0 0
  %288 = vperm.xlu0 %287, %v22
  %v289 = vpop.permute.xlu0 %288
  %292 = vset.pattern.permute.xlu0 0
  %293 = vperm.xlu0 %292, %v23
  %v294 = vpop.permute.xlu0 %293
  %297 = vset.pattern.permute.xlu0 0
  %298 = vperm.xlu0 %297, %v24
  %v299 = vpop.permute.xlu0 %298
  %302 = vset.pattern.permute.xlu0 0
  %303 = vperm.xlu0 %302, %v25
  %v304 = vpop.permute.xlu0 %303
  %307 = vset.pattern.permute.xlu0 0
  %308 = vperm.xlu0 %307, %v26
  %v309 = vpop.permute.xlu0 %308
  %312 = vset.pattern.permute.xlu0 0
  %313 = vperm.xlu0 %312, %v27
  %v314 = vpop.permute.xlu0 %313
  %317 = vset.pattern.permute.xlu0 0
  %318 = vperm.xlu0 %317, %v28
  %v319 = vpop.permute.xlu0 %318
  %322 = vset.pattern.permute.xlu0 0
  %323 = vperm.xlu0 %322, %v29
  %v324 = vpop.permute.xlu0 %323
  %327 = vset.pattern.permute.xlu0 0
  %328 = vperm.xlu0 %327, %v30
  %v329 = vpop.permute.xlu0 %328
  %332 = vset.pattern.permute.xlu0 0
  %333 = vperm.xlu0 %332, %v31
  %v334 = vpop.permute.xlu0 %333
  %337 = vset.pattern.permute.xlu0 0
  %338 = vperm.xlu0 %337, %v32
  %v339 = vpop.permute.xlu0 %338
  %342 = vset.pattern.permute.xlu0 0
  %343 = vperm.xlu0 %342, %v33
  %v344 = vpop.permute.xlu0 %343
  %347 = vset.pattern.permute.xlu0 0
  %348 = vperm.xlu0 %347, %v34
  %v349 = vpop.permute.xlu0 %348
  %352 = vset.pattern.permute.xlu0 0
  %353 = vperm.xlu0 %352, %v35
  %v354 = vpop.permute.xlu0 %353
  %357 = vset.pattern.permute.xlu0 0
  %358 = vperm.xlu0 %357, %v36
  %v359 = vpop.permute.xlu0 %358
  %362 = vset.pattern.permute.xlu0 0
  %363 = vperm.xlu0 %362, %v37
  %v364 = vpop.permute.xlu0 %363
  %367 = vset.pattern.permute.xlu0 0
  %368 = vperm.xlu0 %367, %v38
  %v369 = vpop.permute.xlu0 %368
  %372 = vset.pattern.permute.xlu0 0
  %373 = vperm.xlu0 %372, %v39
  %v374 = vpop.permute.xlu0 %373
  %377 = vset.pattern.permute.xlu0 0
  %378 = vperm.xlu0 %377, %v40
  %v379 = vpop.permute.xlu0 %378
  %382 = vset.pattern.permute.xlu0 0
  %383 = vperm.xlu0 %382, %v41
  %v384 = vpop.permute.xlu0 %383
  %387 = vset.pattern.permute.xlu0 0
  %388 = vperm.xlu0 %387, %v42
  %v389 = vpop.permute.xlu0 %388
  %392 = vset.pattern.permute.xlu0 0
  %393 = vperm.xlu0 %392, %v43
  %v394 = vpop.permute.xlu0 %393
  %397 = vset.pattern.permute.xlu0 0
  %398 = vperm.xlu0 %397, %v44
  %v399 = vpop.permute.xlu0 %398
  %402 = vset.pattern.permute.xlu0 0
  %403 = vperm.xlu0 %402, %v45
  %v404 = vpop.permute.xlu0 %403
  %407 = vset.pattern.permute.xlu0 0
  %408 = vperm.xlu0 %407, %v46
  %v409 = vpop.permute.xlu0 %408
  %412 = vset.pattern.permute.xlu0 0
  %413 = vperm.xlu0 %412, %v47
  %v414 = vpop.permute.xlu0 %413
  %417 = vset.pattern.permute.xlu0 0
  %418 = vperm.xlu0 %417, %v48
  %v419 = vpop.permute.xlu0 %418
  %422 = vset.pattern.permute.xlu0 0
  %423 = vperm.xlu0 %422, %v49
  %v424 = vpop.permute.xlu0 %423
  %427 = vset.pattern.permute.xlu0 0
  %428 = vperm.xlu0 %427, %v50
  %v429 = vpop.permute.xlu0 %428
  %432 = vset.pattern.permute.xlu0 0
  %433 = vperm.xlu0 %432, %v51
  %v434 = vpop.permute.xlu0 %433
  %437 = vset.pattern.permute.xlu0 0
  %438 = vperm.xlu0 %437, %v52
  %v439 = vpop.permute.xlu0 %438
  %442 = vset.pattern.permute.xlu0 0
  %443 = vperm.xlu0 %442, %v53
  %v444 = vpop.permute.xlu0 %443
  %447 = vset.pattern.permute.xlu0 0
  %448 = vperm.xlu0 %447, %v54
  %v449 = vpop.permute.xlu0 %448
  %452 = vset.pattern.permute.xlu0 0
  %453 = vperm.xlu0 %452, %v55
  %v454 = vpop.permute.xlu0 %453
  %457 = vset.pattern.permute.xlu0 0
  %458 = vperm.xlu0 %457, %v56
  %v459 = vpop.permute.xlu0 %458
  %462 = vset.pattern.permute.xlu0 0
  %463 = vperm.xlu0 %462, %v57
  %v464 = vpop.permute.xlu0 %463
  %467 = vset.pattern.permute.xlu0 0
  %468 = vperm.xlu0 %467, %v58
  %v469 = vpop.permute.xlu0 %468
  %472 = vset.pattern.permute.xlu0 0
  %473 = vperm.xlu0 %472, %v59
  %v474 = vpop.permute.xlu0 %473
  %477 = vset.pattern.permute.xlu0 0
  %478 = vperm.xlu0 %477, %v60
  %v479 = vpop.permute.xlu0 %478
  %482 = vset.pattern.permute.xlu0 0
  %483 = vperm.xlu0 %482, %v61
  %v484 = vpop.permute.xlu0 %483
  %487 = vset.pattern.permute.xlu0 0
  %488 = vperm.xlu0 %487, %v62
  %v489 = vpop.permute.xlu0 %488
  %492 = vset.pattern.permute.xlu0 0
  %493 = vperm.xlu0 %492, %v63
  %v494 = vpop.permute.xlu0 %493
  %497 = vset.pattern.permute.xlu0 0
  %498 = vperm.xlu0 %497, %v64
  %v499 = vpop.permute.xlu0 %498
  %502 = vset.pattern.permute.xlu0 0
  %503 = vperm.xlu0 %502, %v65
  %v504 = vpop.permute.xlu0 %503
  %507 = vset.pattern.permute.xlu0 0
  %508 = vperm.xlu0 %507, %v66
  %v509 = vpop.permute.xlu0 %508
  %512 = vset.pattern.permute.xlu0 0
  %513 = vperm.xlu0 %512, %v67
  %v514 = vpop.permute.xlu0 %513
  %517 = vset.pattern.permute.xlu0 0
  %518 = vperm.xlu0 %517, %v68
  %v519 = vpop.permute.xlu0 %518
  %522 = vset.pattern.permute.xlu0 0
  %523 = vperm.xlu0 %522, %v69
  %v524 = vpop.permute.xlu0 %523
  %527 = vset.pattern.permute.xlu0 0
  %528 = vperm.xlu0 %527, %v70
  %v529 = vpop.permute.xlu0 %528
  %532 = vset.pattern.permute.xlu0 0
  %533 = vperm.xlu0 %532, %v71
  %v534 = vpop.permute.xlu0 %533
  %537 = vset.pattern.permute.xlu0 0
  %538 = vperm.xlu0 %537, %v72
  %v539 = vpop.permute.xlu0 %538
  %542 = vset.pattern.permute.xlu0 0
  %543 = vperm.xlu0 %542, %v73
  %v544 = vpop.permute.xlu0 %543
  %547 = vset.pattern.permute.xlu0 0
  %548 = vperm.xlu0 %547, %v74
  %v549 = vpop.permute.xlu0 %548
  %552 = vset.pattern.permute.xlu0 0
  %553 = vperm.xlu0 %552, %v75
  %v554 = vpop.permute.xlu0 %553
  %557 = vset.pattern.permute.xlu0 0
  %558 = vperm.xlu0 %557, %v76
  %v559 = vpop.permute.xlu0 %558
  %562 = vset.pattern.permute.xlu0 0
  %563 = vperm.xlu0 %562, %v77
  %v564 = vpop.permute.xlu0 %563
  %567 = vset.pattern.permute.xlu0 0
  %568 = vperm.xlu0 %567, %v78
  %v569 = vpop.permute.xlu0 %568
  %572 = vset.pattern.permute.xlu0 0
  %573 = vperm.xlu0 %572, %v79
  %v574 = vpop.permute.xlu0 %573
  %577 = vset.pattern.permute.xlu0 0
  %578 = vperm.xlu0 %577, %v80
  %v579 = vpop.permute.xlu0 %578
  %582 = vset.pattern.permute.xlu0 0
  %583 = vperm.xlu0 %582, %v81
  %v584 = vpop.permute.xlu0 %583
  %587 = vset.pattern.permute.xlu0 0
  %588 = vperm.xlu0 %587, %v82
  %v589 = vpop.permute.xlu0 %588
  %592 = vset.pattern.permute.xlu0 0
  %593 = vperm.xlu0 %592, %v83
  %v594 = vpop.permute.xlu0 %593
  %597 = vset.pattern.permute.xlu0 0
  %598 = vperm.xlu0 %597, %v84
  %v599 = vpop.permute.xlu0 %598
  %602 = vset.pattern.permute.xlu0 0
  %603 = vperm.xlu0 %602, %v85
  %v604 = vpop.permute.xlu0 %603
  %607 = vset.pattern.permute.xlu0 0
  %608 = vperm.xlu0 %607, %v86
  %v609 = vpop.permute.xlu0 %608
  %612 = vset.pattern.permute.xlu0 0
  %613 = vperm.xlu0 %612, %v87
  %v614 = vpop.permute.xlu0 %613
  %617 = vset.pattern.permute.xlu0 0
  %618 = vperm.xlu0 %617, %v88
  %v619 = vpop.permute.xlu0 %618
  %622 = vset.pattern.permute.xlu0 0
  %623 = vperm.xlu0 %622, %v89
  %v624 = vpop.permute.xlu0 %623
  %627 = vset.pattern.permute.xlu0 0
  %628 = vperm.xlu0 %627, %v90
  %v629 = vpop.permute.xlu0 %628
  %632 = vset.pattern.permute.xlu0 0
  %633 = vperm.xlu0 %632, %v91
  %v634 = vpop.permute.xlu0 %633
  %637 = vset.pattern.permute.xlu0 0
  %638 = vperm.xlu0 %637, %v92
  %v639 = vpop.permute.xlu0 %638
  %642 = vset.pattern.permute.xlu0 0
  %643 = vperm.xlu0 %642, %v93
  %v644 = vpop.permute.xlu0 %643
  %647 = vset.pattern.permute.xlu0 0
  %648 = vperm.xlu0 %647, %v94
  %v649 = vpop.permute.xlu0 %648
  %652 = vset.pattern.permute.xlu0 0
  %653 = vperm.xlu0 %652, %v95
  %v654 = vpop.permute.xlu0 %653
  %657 = vset.pattern.permute.xlu0 0
  %658 = vperm.xlu0 %657, %v96
  %v659 = vpop.permute.xlu0 %658
  %662 = vset.pattern.permute.xlu0 0
  %663 = vperm.xlu0 %662, %v97
  %v664 = vpop.permute.xlu0 %663
  %667 = vset.pattern.permute.xlu0 0
  %668 = vperm.xlu0 %667, %v98
  %v669 = vpop.permute.xlu0 %668
  %672 = vset.pattern.permute.xlu0 0
  %673 = vperm.xlu0 %672, %v99
  %v674 = vpop.permute.xlu0 %673
  %677 = vset.pattern.permute.xlu0 0
  %678 = vperm.xlu0 %677, %v100
  %v679 = vpop.permute.xlu0 %678
  %682 = vset.pattern.permute.xlu0 0
  %683 = vperm.xlu0 %682, %v101
  %v684 = vpop.permute.xlu0 %683
  %687 = vset.pattern.permute.xlu0 0
  %688 = vperm.xlu0 %687, %v102
  %v689 = vpop.permute.xlu0 %688
  %692 = vset.pattern.permute.xlu0 0
  %693 = vperm.xlu0 %692, %v103
  %v694 = vpop.permute.xlu0 %693
  %697 = vset.pattern.permute.xlu0 0
  %698 = vperm.xlu0 %697, %v104
  %v699 = vpop.permute.xlu0 %698
  %702 = vset.pattern.permute.xlu0 0
  %703 = vperm.xlu0 %702, %v105
  %v704 = vpop.permute.xlu0 %703
  %707 = vset.pattern.permute.xlu0 0
  %708 = vperm.xlu0 %707, %v106
  %v709 = vpop.permute.xlu0 %708
  %712 = vset.pattern.permute.xlu0 0
  %713 = vperm.xlu0 %712, %v107
  %v714 = vpop.permute.xlu0 %713
  %717 = vset.pattern.permute.xlu0 0
  %718 = vperm.xlu0 %717, %v108
  %v719 = vpop.permute.xlu0 %718
  %722 = vset.pattern.permute.xlu0 0
  %723 = vperm.xlu0 %722, %v109
  %v724 = vpop.permute.xlu0 %723
  %727 = vset.pattern.permute.xlu0 0
  %728 = vperm.xlu0 %727, %v110
  %v729 = vpop.permute.xlu0 %728
  %732 = vset.pattern.permute.xlu0 0
  %733 = vperm.xlu0 %732, %v111
  %v734 = vpop.permute.xlu0 %733
  %737 = vset.pattern.permute.xlu0 0
  %738 = vperm.xlu0 %737, %v112
  %v739 = vpop.permute.xlu0 %738
  %742 = vset.pattern.permute.xlu0 0
  %743 = vperm.xlu0 %742, %v113
  %v744 = vpop.permute.xlu0 %743
  %747 = vset.pattern.permute.xlu0 0
  %748 = vperm.xlu0 %747, %v114
  %v749 = vpop.permute.xlu0 %748
  %752 = vset.pattern.permute.xlu0 0
  %753 = vperm.xlu0 %752, %v115
  %v754 = vpop.permute.xlu0 %753
  %757 = vset.pattern.permute.xlu0 0
  %758 = vperm.xlu0 %757, %v116
  %v759 = vpop.permute.xlu0 %758
  %762 = vset.pattern.permute.xlu0 0
  %763 = vperm.xlu0 %762, %v117
  %v764 = vpop.permute.xlu0 %763
  %767 = vset.pattern.permute.xlu0 0
  %768 = vperm.xlu0 %767, %v118
  %v769 = vpop.permute.xlu0 %768
  %772 = vset.pattern.permute.xlu0 0
  %773 = vperm.xlu0 %772, %v119
  %v774 = vpop.permute.xlu0 %773
  %777 = vset.pattern.permute.xlu0 0
  %778 = vperm.xlu0 %777, %v120
  %v779 = vpop.permute.xlu0 %778
  %782 = vset.pattern.permute.xlu0 0
  %783 = vperm.xlu0 %782, %v121
  %v784 = vpop.permute.xlu0 %783
  %787 = vset.pattern.permute.xlu0 0
  %788 = vperm.xlu0 %787, %v122
  %v789 = vpop.permute.xlu0 %788
  %792 = vset.pattern.permute.xlu0 0
  %793 = vperm.xlu0 %792, %v123
  %v794 = vpop.permute.xlu0 %793
  %797 = vset.pattern.permute.xlu0 0
  %798 = vperm.xlu0 %797, %v124
  %v799 = vpop.permute.xlu0 %798
  %802 = vset.pattern.permute.xlu0 0
  %803 = vperm.xlu0 %802, %v125
  %v804 = vpop.permute.xlu0 %803
  %807 = vset.pattern.permute.xlu0 0
  %808 = vperm.xlu0 %807, %v126
  %v809 = vpop.permute.xlu0 %808
  %812 = vset.pattern.permute.xlu0 0
  %813 = vperm.xlu0 %812, %v127
  %v814 = vpop.permute.xlu0 %813
  %817 = vset.pattern.permute.xlu0 0
  %818 = vperm.xlu0 %817, %v128
  %v819 = vpop.permute.xlu0 %818
  %822 = vset.pattern.permute.xlu0 0
  %823 = vperm.xlu0 %822, %v129
  %v824 = vpop.permute.xlu0 %823
  %827 = vset.pattern.permute.xlu0 0
  %828 = vperm.xlu0 %827, %v130
  %v829 = vpop.permute.xlu0 %828
  %832 = vset.pattern.permute.xlu0 0
  %833 = vperm.xlu0 %832, %v131
  %v834 = vpop.permute.xlu0 %833
  %837 = vset.pattern.permute.xlu0 0
  %838 = vperm.xlu0 %837, %v132
  %v839 = vpop.permute.xlu0 %838
  %842 = vset.pattern.permute.xlu0 0
  %843 = vperm.xlu0 %842, %v133
  %v844 = vpop.permute.xlu0 %843
  %847 = vset.pattern.permute.xlu0 0
  %848 = vperm.xlu0 %847, %v134
  %v849 = vpop.permute.xlu0 %848
  %852 = vset.pattern.permute.xlu0 0
  %853 = vperm.xlu0 %852, %v135
  %v854 = vpop.permute.xlu0 %853
  %857 = vset.pattern.permute.xlu0 0
  %858 = vperm.xlu0 %857, %v136
  %v859 = vpop.permute.xlu0 %858
  %862 = vset.pattern.permute.xlu0 0
  %863 = vperm.xlu0 %862, %v137
  %v864 = vpop.permute.xlu0 %863
  %867 = vset.pattern.permute.xlu0 0
  %868 = vperm.xlu0 %867, %v138
  %v869 = vpop.permute.xlu0 %868
  %872 = vset.pattern.permute.xlu0 0
  %873 = vperm.xlu0 %872, %v139
  %v874 = vpop.permute.xlu0 %873
  %877 = vset.pattern.permute.xlu0 0
  %878 = vperm.xlu0 %877, %v140
  %v879 = vpop.permute.xlu0 %878
  %882 = vset.pattern.permute.xlu0 0
  %883 = vperm.xlu0 %882, %v141
  %v884 = vpop.permute.xlu0 %883
  %887 = vset.pattern.permute.xlu0 0
  %888 = vperm.xlu0 %887, %v142
  %v889 = vpop.permute.xlu0 %888
  %892 = vset.pattern.permute.xlu0 0
  %893 = vperm.xlu0 %892, %v143
  %v894 = vpop.permute.xlu0 %893
  %897 = vset.pattern.permute.xlu0 0
  %898 = vperm.xlu0 %897, %v144
  %v899 = vpop.permute.xlu0 %898
  %902 = vset.pattern.permute.xlu0 0
  %903 = vperm.xlu0 %902, %v145
  %v904 = vpop.permute.xlu0 %903
  %907 = vset.pattern.permute.xlu0 0
  %908 = vperm.xlu0 %907, %v146
  %v909 = vpop.permute.xlu0 %908
  %912 = vset.pattern.permute.xlu0 0
  %913 = vperm.xlu0 %912, %v147
  %v914 = vpop.permute.xlu0 %913
  %v916 = vmul.f32 %v279, %v148
  %v917 = vmul.f32 %v284, %v149
  %v918 = vmul.f32 %v289, %v150
  %v919 = vmul.f32 %v294, %v151
  %v920 = vmul.f32 %v299, %v152
  %v921 = vmul.f32 %v304, %v153
  %v922 = vmul.f32 %v309, %v154
  %v923 = vmul.f32 %v314, %v155
  %v924 = vmul.f32 %v319, %v156
  %v925 = vmul.f32 %v324, %v157
  %v926 = vmul.f32 %v329, %v158
  %v927 = vmul.f32 %v334, %v159
  %v928 = vmul.f32 %v339, %v160
  %v929 = vmul.f32 %v344, %v161
  %v930 = vmul.f32 %v349, %v162
  %v931 = vmul.f32 %v354, %v163
  %v932 = vmul.f32 %v359, %v164
  %v933 = vmul.f32 %v364, %v165
  %v934 = vmul.f32 %v369, %v166
  %v935 = vmul.f32 %v374, %v167
  %v936 = vmul.f32 %v379, %v168
  %v937 = vmul.f32 %v384, %v169
  %v938 = vmul.f32 %v389, %v170
  %v939 = vmul.f32 %v394, %v171
  %v940 = vmul.f32 %v399, %v172
  %v941 = vmul.f32 %v404, %v173
  %v942 = vmul.f32 %v409, %v174
  %v943 = vmul.f32 %v414, %v175
  %v944 = vmul.f32 %v419, %v176
  %v945 = vmul.f32 %v424, %v177
  %v946 = vmul.f32 %v429, %v178
  %v947 = vmul.f32 %v434, %v179
  %v948 = vmul.f32 %v439, %v180
  %v949 = vmul.f32 %v444, %v181
  %v950 = vmul.f32 %v449, %v182
  %v951 = vmul.f32 %v454, %v183
  %v952 = vmul.f32 %v459, %v184
  %v953 = vmul.f32 %v464, %v185
  %v954 = vmul.f32 %v469, %v186
  %v955 = vmul.f32 %v474, %v187
  %v956 = vmul.f32 %v479, %v188
  %v957 = vmul.f32 %v484, %v189
  %v958 = vmul.f32 %v489, %v190
  %v959 = vmul.f32 %v494, %v191
  %v960 = vmul.f32 %v499, %v192
  %v961 = vmul.f32 %v504, %v193
  %v962 = vmul.f32 %v509, %v194
  %v963 = vmul.f32 %v514, %v195
  %v964 = vmul.f32 %v519, %v196
  %v965 = vmul.f32 %v524, %v197
  %v966 = vmul.f32 %v529, %v198
  %v967 = vmul.f32 %v534, %v199
  %v968 = vmul.f32 %v539, %v200
  %v969 = vmul.f32 %v544, %v201
  %v970 = vmul.f32 %v549, %v202
  %v971 = vmul.f32 %v554, %v203
  %v972 = vmul.f32 %v559, %v204
  %v973 = vmul.f32 %v564, %v205
  %v974 = vmul.f32 %v569, %v206
  %v975 = vmul.f32 %v574, %v207
  %v976 = vmul.f32 %v579, %v208
  %v977 = vmul.f32 %v584, %v209
  %v978 = vmul.f32 %v589, %v210
  %v979 = vmul.f32 %v594, %v211
  %v980 = vmul.f32 %v599, %v212
  %v981 = vmul.f32 %v604, %v213
  %v982 = vmul.f32 %v609, %v214
  %v983 = vmul.f32 %v614, %v215
  %v984 = vmul.f32 %v619, %v216
  %v985 = vmul.f32 %v624, %v217
  %v986 = vmul.f32 %v629, %v218
  %v987 = vmul.f32 %v634, %v219
  %v988 = vmul.f32 %v639, %v220
  %v989 = vmul.f32 %v644, %v221
  %v990 = vmul.f32 %v649, %v222
  %v991 = vmul.f32 %v654, %v223
  %v992 = vmul.f32 %v659, %v224
  %v993 = vmul.f32 %v664, %v225
  %v994 = vmul.f32 %v669, %v226
  %v995 = vmul.f32 %v674, %v227
  %v996 = vmul.f32 %v679, %v228
  %v997 = vmul.f32 %v684, %v229
  %v998 = vmul.f32 %v689, %v230
  %v999 = vmul.f32 %v694, %v231
  %v1000 = vmul.f32 %v699, %v232
  %v1001 = vmul.f32 %v704, %v233
  %v1002 = vmul.f32 %v709, %v234
  %v1003 = vmul.f32 %v714, %v235
  %v1004 = vmul.f32 %v719, %v236
  %v1005 = vmul.f32 %v724, %v237
  %v1006 = vmul.f32 %v729, %v238
  %v1007 = vmul.f32 %v734, %v239
  %v1008 = vmul.f32 %v739, %v240
  %v1009 = vmul.f32 %v744, %v241
  %v1010 = vmul.f32 %v749, %v242
  %v1011 = vmul.f32 %v754, %v243
  %v1012 = vmul.f32 %v759, %v244
  %v1013 = vmul.f32 %v764, %v245
  %v1014 = vmul.f32 %v769, %v246
  %v1015 = vmul.f32 %v774, %v247
  %v1016 = vmul.f32 %v779, %v248
  %v1017 = vmul.f32 %v784, %v249
  %v1018 = vmul.f32 %v789, %v250
  %v1019 = vmul.f32 %v794, %v251
  %v1020 = vmul.f32 %v799, %v252
  %v1021 = vmul.f32 %v804, %v253
  %v1022 = vmul.f32 %v809, %v254
  %v1023 = vmul.f32 %v814, %v255
  %v1024 = vmul.f32 %v819, %v256
  %v1025 = vmul.f32 %v824, %v257
  %v1026 = vmul.f32 %v829, %v258
  %v1027 = vmul.f32 %v834, %v259
  %v1028 = vmul.f32 %v839, %v260
  %v1029 = vmul.f32 %v844, %v261
  %v1030 = vmul.f32 %v849, %v262
  %v1031 = vmul.f32 %v854, %v263
  %v1032 = vmul.f32 %v859, %v264
  %v1033 = vmul.f32 %v864, %v265
  %v1034 = vmul.f32 %v869, %v266
  %v1035 = vmul.f32 %v874, %v267
  %v1036 = vmul.f32 %v879, %v268
  %v1037 = vmul.f32 %v884, %v269
  %v1038 = vmul.f32 %v889, %v270
  %v1039 = vmul.f32 %v894, %v271
  %v1040 = vmul.f32 %v899, %v272
  %v1041 = vmul.f32 %v904, %v273
  %v1042 = vmul.f32 %v909, %v274
  %v1043 = vmul.f32 %v914, %v275
  %v1044 = vlaneseq
  %v1045 = vshrl.u32 %v1044, 7
  %v1046 = vsub.s32 0, %v1045
  %v1047 = vrot.slane %v18, %v1046
  %v1048 = vadd.f32 %v916, %v1047
  %v1049 = vadd.f32 %v917, %v1047
  %v1050 = vadd.f32 %v918, %v1047
  %v1051 = vadd.f32 %v919, %v1047
  %v1052 = vadd.f32 %v920, %v1047
  %v1053 = vadd.f32 %v921, %v1047
  %v1054 = vadd.f32 %v922, %v1047
  %v1055 = vadd.f32 %v923, %v1047
  %v1056 = vadd.f32 %v924, %v1047
  %v1057 = vadd.f32 %v925, %v1047
  %v1058 = vadd.f32 %v926, %v1047
  %v1059 = vadd.f32 %v927, %v1047
  %v1060 = vadd.f32 %v928, %v1047
  %v1061 = vadd.f32 %v929, %v1047
  %v1062 = vadd.f32 %v930, %v1047
  %v1063 = vadd.f32 %v931, %v1047
  %v1064 = vadd.f32 %v932, %v1047
  %v1065 = vadd.f32 %v933, %v1047
  %v1066 = vadd.f32 %v934, %v1047
  %v1067 = vadd.f32 %v935, %v1047
  %v1068 = vadd.f32 %v936, %v1047
  %v1069 = vadd.f32 %v937, %v1047
  %v1070 = vadd.f32 %v938, %v1047
  %v1071 = vadd.f32 %v939, %v1047
  %v1072 = vadd.f32 %v940, %v1047
  %v1073 = vadd.f32 %v941, %v1047
  %v1074 = vadd.f32 %v942, %v1047
  %v1075 = vadd.f32 %v943, %v1047
  %v1076 = vadd.f32 %v944, %v1047
  %v1077 = vadd.f32 %v945, %v1047
  %v1078 = vadd.f32 %v946, %v1047
  %v1079 = vadd.f32 %v947, %v1047
  %v1080 = vadd.f32 %v948, %v1047
  %v1081 = vadd.f32 %v949, %v1047
  %v1082 = vadd.f32 %v950, %v1047
  %v1083 = vadd.f32 %v951, %v1047
  %v1084 = vadd.f32 %v952, %v1047
  %v1085 = vadd.f32 %v953, %v1047
  %v1086 = vadd.f32 %v954, %v1047
  %v1087 = vadd.f32 %v955, %v1047
  %v1088 = vadd.f32 %v956, %v1047
  %v1089 = vadd.f32 %v957, %v1047
  %v1090 = vadd.f32 %v958, %v1047
  %v1091 = vadd.f32 %v959, %v1047
  %v1092 = vadd.f32 %v960, %v1047
  %v1093 = vadd.f32 %v961, %v1047
  %v1094 = vadd.f32 %v962, %v1047
  %v1095 = vadd.f32 %v963, %v1047
  %v1096 = vadd.f32 %v964, %v1047
  %v1097 = vadd.f32 %v965, %v1047
  %v1098 = vadd.f32 %v966, %v1047
  %v1099 = vadd.f32 %v967, %v1047
  %v1100 = vadd.f32 %v968, %v1047
  %v1101 = vadd.f32 %v969, %v1047
  %v1102 = vadd.f32 %v970, %v1047
  %v1103 = vadd.f32 %v971, %v1047
  %v1104 = vadd.f32 %v972, %v1047
  %v1105 = vadd.f32 %v973, %v1047
  %v1106 = vadd.f32 %v974, %v1047
  %v1107 = vadd.f32 %v975, %v1047
  %v1108 = vadd.f32 %v976, %v1047
  %v1109 = vadd.f32 %v977, %v1047
  %v1110 = vadd.f32 %v978, %v1047
  %v1111 = vadd.f32 %v979, %v1047
  %v1112 = vadd.f32 %v980, %v1047
  %v1113 = vadd.f32 %v981, %v1047
  %v1114 = vadd.f32 %v982, %v1047
  %v1115 = vadd.f32 %v983, %v1047
  %v1116 = vadd.f32 %v984, %v1047
  %v1117 = vadd.f32 %v985, %v1047
  %v1118 = vadd.f32 %v986, %v1047
  %v1119 = vadd.f32 %v987, %v1047
  %v1120 = vadd.f32 %v988, %v1047
  %v1121 = vadd.f32 %v989, %v1047
  %v1122 = vadd.f32 %v990, %v1047
  %v1123 = vadd.f32 %v991, %v1047
  %v1124 = vadd.f32 %v992, %v1047
  %v1125 = vadd.f32 %v993, %v1047
  %v1126 = vadd.f32 %v994, %v1047
  %v1127 = vadd.f32 %v995, %v1047
  %v1128 = vadd.f32 %v996, %v1047
  %v1129 = vadd.f32 %v997, %v1047
  %v1130 = vadd.f32 %v998, %v1047
  %v1131 = vadd.f32 %v999, %v1047
  %v1132 = vadd.f32 %v1000, %v1047
  %v1133 = vadd.f32 %v1001, %v1047
  %v1134 = vadd.f32 %v1002, %v1047
  %v1135 = vadd.f32 %v1003, %v1047
  %v1136 = vadd.f32 %v1004, %v1047
  %v1137 = vadd.f32 %v1005, %v1047
  %v1138 = vadd.f32 %v1006, %v1047
  %v1139 = vadd.f32 %v1007, %v1047
  %v1140 = vadd.f32 %v1008, %v1047
  %v1141 = vadd.f32 %v1009, %v1047
  %v1142 = vadd.f32 %v1010, %v1047
  %v1143 = vadd.f32 %v1011, %v1047
  %v1144 = vadd.f32 %v1012, %v1047
  %v1145 = vadd.f32 %v1013, %v1047
  %v1146 = vadd.f32 %v1014, %v1047
  %v1147 = vadd.f32 %v1015, %v1047
  %v1148 = vadd.f32 %v1016, %v1047
  %v1149 = vadd.f32 %v1017, %v1047
  %v1150 = vadd.f32 %v1018, %v1047
  %v1151 = vadd.f32 %v1019, %v1047
  %v1152 = vadd.f32 %v1020, %v1047
  %v1153 = vadd.f32 %v1021, %v1047
  %v1154 = vadd.f32 %v1022, %v1047
  %v1155 = vadd.f32 %v1023, %v1047
  %v1156 = vadd.f32 %v1024, %v1047
  %v1157 = vadd.f32 %v1025, %v1047
  %v1158 = vadd.f32 %v1026, %v1047
  %v1159 = vadd.f32 %v1027, %v1047
  %v1160 = vadd.f32 %v1028, %v1047
  %v1161 = vadd.f32 %v1029, %v1047
  %v1162 = vadd.f32 %v1030, %v1047
  %v1163 = vadd.f32 %v1031, %v1047
  %v1164 = vadd.f32 %v1032, %v1047
  %v1165 = vadd.f32 %v1033, %v1047
  %v1166 = vadd.f32 %v1034, %v1047
  %v1167 = vadd.f32 %v1035, %v1047
  %v1168 = vadd.f32 %v1036, %v1047
  %v1169 = vadd.f32 %v1037, %v1047
  %v1170 = vadd.f32 %v1038, %v1047
  %v1171 = vadd.f32 %v1039, %v1047
  %v1172 = vadd.f32 %v1040, %v1047
  %v1173 = vadd.f32 %v1041, %v1047
  %v1174 = vadd.f32 %v1042, %v1047
  %v1175 = vadd.f32 %v1043, %v1047
  %v1176 = vmax.f32 %v1048, 0.0
  %v1177 = vmax.f32 %v1049, 0.0
  %v1178 = vmax.f32 %v1050, 0.0
  %v1179 = vmax.f32 %v1051, 0.0
  %v1180 = vmax.f32 %v1052, 0.0
  %v1181 = vmax.f32 %v1053, 0.0
  %v1182 = vmax.f32 %v1054, 0.0
  %v1183 = vmax.f32 %v1055, 0.0
  %v1184 = vmax.f32 %v1056, 0.0
  %v1185 = vmax.f32 %v1057, 0.0
  %v1186 = vmax.f32 %v1058, 0.0
  %v1187 = vmax.f32 %v1059, 0.0
  %v1188 = vmax.f32 %v1060, 0.0
  %v1189 = vmax.f32 %v1061, 0.0
  %v1190 = vmax.f32 %v1062, 0.0
  %v1191 = vmax.f32 %v1063, 0.0
  %v1192 = vmax.f32 %v1064, 0.0
  %v1193 = vmax.f32 %v1065, 0.0
  %v1194 = vmax.f32 %v1066, 0.0
  %v1195 = vmax.f32 %v1067, 0.0
  %v1196 = vmax.f32 %v1068, 0.0
  %v1197 = vmax.f32 %v1069, 0.0
  %v1198 = vmax.f32 %v1070, 0.0
  %v1199 = vmax.f32 %v1071, 0.0
  %v1200 = vmax.f32 %v1072, 0.0
  %v1201 = vmax.f32 %v1073, 0.0
  %v1202 = vmax.f32 %v1074, 0.0
  %v1203 = vmax.f32 %v1075, 0.0
  %v1204 = vmax.f32 %v1076, 0.0
  %v1205 = vmax.f32 %v1077, 0.0
  %v1206 = vmax.f32 %v1078, 0.0
  %v1207 = vmax.f32 %v1079, 0.0
  %v1208 = vmax.f32 %v1080, 0.0
  %v1209 = vmax.f32 %v1081, 0.0
  %v1210 = vmax.f32 %v1082, 0.0
  %v1211 = vmax.f32 %v1083, 0.0
  %v1212 = vmax.f32 %v1084, 0.0
  %v1213 = vmax.f32 %v1085, 0.0
  %v1214 = vmax.f32 %v1086, 0.0
  %v1215 = vmax.f32 %v1087, 0.0
  %v1216 = vmax.f32 %v1088, 0.0
  %v1217 = vmax.f32 %v1089, 0.0
  %v1218 = vmax.f32 %v1090, 0.0
  %v1219 = vmax.f32 %v1091, 0.0
  %v1220 = vmax.f32 %v1092, 0.0
  %v1221 = vmax.f32 %v1093, 0.0
  %v1222 = vmax.f32 %v1094, 0.0
  %v1223 = vmax.f32 %v1095, 0.0
  %v1224 = vmax.f32 %v1096, 0.0
  %v1225 = vmax.f32 %v1097, 0.0
  %v1226 = vmax.f32 %v1098, 0.0
  %v1227 = vmax.f32 %v1099, 0.0
  %v1228 = vmax.f32 %v1100, 0.0
  %v1229 = vmax.f32 %v1101, 0.0
  %v1230 = vmax.f32 %v1102, 0.0
  %v1231 = vmax.f32 %v1103, 0.0
  %v1232 = vmax.f32 %v1104, 0.0
  %v1233 = vmax.f32 %v1105, 0.0
  %v1234 = vmax.f32 %v1106, 0.0
  %v1235 = vmax.f32 %v1107, 0.0
  %v1236 = vmax.f32 %v1108, 0.0
  %v1237 = vmax.f32 %v1109, 0.0
  %v1238 = vmax.f32 %v1110, 0.0
  %v1239 = vmax.f32 %v1111, 0.0
  %v1240 = vmax.f32 %v1112, 0.0
  %v1241 = vmax.f32 %v1113, 0.0
  %v1242 = vmax.f32 %v1114, 0.0
  %v1243 = vmax.f32 %v1115, 0.0
  %v1244 = vmax.f32 %v1116, 0.0
  %v1245 = vmax.f32 %v1117, 0.0
  %v1246 = vmax.f32 %v1118, 0.0
  %v1247 = vmax.f32 %v1119, 0.0
  %v1248 = vmax.f32 %v1120, 0.0
  %v1249 = vmax.f32 %v1121, 0.0
  %v1250 = vmax.f32 %v1122, 0.0
  %v1251 = vmax.f32 %v1123, 0.0
  %v1252 = vmax.f32 %v1124, 0.0
  %v1253 = vmax.f32 %v1125, 0.0
  %v1254 = vmax.f32 %v1126, 0.0
  %v1255 = vmax.f32 %v1127, 0.0
  %v1256 = vmax.f32 %v1128, 0.0
  %v1257 = vmax.f32 %v1129, 0.0
  %v1258 = vmax.f32 %v1130, 0.0
  %v1259 = vmax.f32 %v1131, 0.0
  %v1260 = vmax.f32 %v1132, 0.0
  %v1261 = vmax.f32 %v1133, 0.0
  %v1262 = vmax.f32 %v1134, 0.0
  %v1263 = vmax.f32 %v1135, 0.0
  %v1264 = vmax.f32 %v1136, 0.0
  %v1265 = vmax.f32 %v1137, 0.0
  %v1266 = vmax.f32 %v1138, 0.0
  %v1267 = vmax.f32 %v1139, 0.0
  %v1268 = vmax.f32 %v1140, 0.0
  %v1269 = vmax.f32 %v1141, 0.0
  %v1270 = vmax.f32 %v1142, 0.0
  %v1271 = vmax.f32 %v1143, 0.0
  %v1272 = vmax.f32 %v1144, 0.0
  %v1273 = vmax.f32 %v1145, 0.0
  %v1274 = vmax.f32 %v1146, 0.0
  %v1275 = vmax.f32 %v1147, 0.0
  %v1276 = vmax.f32 %v1148, 0.0
  %v1277 = vmax.f32 %v1149, 0.0
  %v1278 = vmax.f32 %v1150, 0.0
  %v1279 = vmax.f32 %v1151, 0.0
  %v1280 = vmax.f32 %v1152, 0.0
  %v1281 = vmax.f32 %v1153, 0.0
  %v1282 = vmax.f32 %v1154, 0.0
  %v1283 = vmax.f32 %v1155, 0.0
  %v1284 = vmax.f32 %v1156, 0.0
  %v1285 = vmax.f32 %v1157, 0.0
  %v1286 = vmax.f32 %v1158, 0.0
  %v1287 = vmax.f32 %v1159, 0.0
  %v1288 = vmax.f32 %v1160, 0.0
  %v1289 = vmax.f32 %v1161, 0.0
  %v1290 = vmax.f32 %v1162, 0.0
  %v1291 = vmax.f32 %v1163, 0.0
  %v1292 = vmax.f32 %v1164, 0.0
  %v1293 = vmax.f32 %v1165, 0.0
  %v1294 = vmax.f32 %v1166, 0.0
  %v1295 = vmax.f32 %v1167, 0.0
  %v1296 = vmax.f32 %v1168, 0.0
  %v1297 = vmax.f32 %v1169, 0.0
  %v1298 = vmax.f32 %v1170, 0.0
  %v1299 = vmax.f32 %v1171, 0.0
  %v1300 = vmax.f32 %v1172, 0.0
  %v1301 = vmax.f32 %v1173, 0.0
  %v1302 = vmax.f32 %v1174, 0.0
  %v1303 = vmax.f32 %v1175, 0.0
  %v1304 = vlaneseq
  %v1305 = vshrl.u32 %v1304, 7
  %v1306 = vsub.s32 0, %v1305
  %v1307 = vrot.slane %v19, %v1306
  %vm1308 = vcmask 261120
  %v1310 = vsel %vm1308, %v1176, 0
  %v1313 = vsel %vm1308, %v1177, 0
  %v1316 = vsel %vm1308, %v1178, 0
  %v1319 = vsel %vm1308, %v1179, 0
  %v1322 = vsel %vm1308, %v1180, 0
  %v1325 = vsel %vm1308, %v1181, 0
  %v1328 = vsel %vm1308, %v1182, 0
  %v1331 = vsel %vm1308, %v1183, 0
  %v1334 = vsel %vm1308, %v1184, 0
  %v1337 = vsel %vm1308, %v1185, 0
  %v1340 = vsel %vm1308, %v1186, 0
  %v1343 = vsel %vm1308, %v1187, 0
  %v1346 = vsel %vm1308, %v1188, 0
  %v1349 = vsel %vm1308, %v1189, 0
  %v1352 = vsel %vm1308, %v1190, 0
  %v1355 = vsel %vm1308, %v1191, 0
  %v1358 = vsel %vm1308, %v1192, 0
  %v1361 = vsel %vm1308, %v1193, 0
  %v1364 = vsel %vm1308, %v1194, 0
  %v1367 = vsel %vm1308, %v1195, 0
  %v1370 = vsel %vm1308, %v1196, 0
  %v1373 = vsel %vm1308, %v1197, 0
  %v1376 = vsel %vm1308, %v1198, 0
  %v1379 = vsel %vm1308, %v1199, 0
  %v1382 = vsel %vm1308, %v1200, 0
  %v1385 = vsel %vm1308, %v1201, 0
  %v1388 = vsel %vm1308, %v1202, 0
  %v1391 = vsel %vm1308, %v1203, 0
  %v1394 = vsel %vm1308, %v1204, 0
  %v1397 = vsel %vm1308, %v1205, 0
  %v1400 = vsel %vm1308, %v1206, 0
  %v1403 = vsel %vm1308, %v1207, 0
  %v1406 = vsel %vm1308, %v1208, 0
  %v1409 = vsel %vm1308, %v1209, 0
  %v1412 = vsel %vm1308, %v1210, 0
  %v1415 = vsel %vm1308, %v1211, 0
  %v1418 = vsel %vm1308, %v1212, 0
  %v1421 = vsel %vm1308, %v1213, 0
  %v1424 = vsel %vm1308, %v1214, 0
  %v1427 = vsel %vm1308, %v1215, 0
  %v1430 = vsel %vm1308, %v1216, 0
  %v1433 = vsel %vm1308, %v1217, 0
  %v1436 = vsel %vm1308, %v1218, 0
  %v1439 = vsel %vm1308, %v1219, 0
  %v1442 = vsel %vm1308, %v1220, 0
  %v1445 = vsel %vm1308, %v1221, 0
  %v1448 = vsel %vm1308, %v1222, 0
  %v1451 = vsel %vm1308, %v1223, 0
  %v1454 = vsel %vm1308, %v1224, 0
  %v1457 = vsel %vm1308, %v1225, 0
  %v1460 = vsel %vm1308, %v1226, 0
  %v1463 = vsel %vm1308, %v1227, 0
  %v1466 = vsel %vm1308, %v1228, 0
  %v1469 = vsel %vm1308, %v1229, 0
  %v1472 = vsel %vm1308, %v1230, 0
  %v1475 = vsel %vm1308, %v1231, 0
  %v1478 = vsel %vm1308, %v1232, 0
  %v1481 = vsel %vm1308, %v1233, 0
  %v1484 = vsel %vm1308, %v1234, 0
  %v1487 = vsel %vm1308, %v1235, 0
  %v1490 = vsel %vm1308, %v1236, 0
  %v1493 = vsel %vm1308, %v1237, 0
  %v1496 = vsel %vm1308, %v1238, 0
  %v1499 = vsel %vm1308, %v1239, 0
  %v1502 = vsel %vm1308, %v1240, 0
  %v1505 = vsel %vm1308, %v1241, 0
  %v1508 = vsel %vm1308, %v1242, 0
  %v1511 = vsel %vm1308, %v1243, 0
  %v1514 = vsel %vm1308, %v1244, 0
  %v1517 = vsel %vm1308, %v1245, 0
  %v1520 = vsel %vm1308, %v1246, 0
  %v1523 = vsel %vm1308, %v1247, 0
  %v1526 = vsel %vm1308, %v1248, 0
  %v1529 = vsel %vm1308, %v1249, 0
  %v1532 = vsel %vm1308, %v1250, 0
  %v1535 = vsel %vm1308, %v1251, 0
  %v1538 = vsel %vm1308, %v1252, 0
  %v1541 = vsel %vm1308, %v1253, 0
  %v1544 = vsel %vm1308, %v1254, 0
  %v1547 = vsel %vm1308, %v1255, 0
  %v1550 = vsel %vm1308, %v1256, 0
  %v1553 = vsel %vm1308, %v1257, 0
  %v1556 = vsel %vm1308, %v1258, 0
  %v1559 = vsel %vm1308, %v1259, 0
  %v1562 = vsel %vm1308, %v1260, 0
  %v1565 = vsel %vm1308, %v1261, 0
  %v1568 = vsel %vm1308, %v1262, 0
  %v1571 = vsel %vm1308, %v1263, 0
  %v1574 = vsel %vm1308, %v1264, 0
  %v1577 = vsel %vm1308, %v1265, 0
  %v1580 = vsel %vm1308, %v1266, 0
  %v1583 = vsel %vm1308, %v1267, 0
  %v1586 = vsel %vm1308, %v1268, 0
  %v1589 = vsel %vm1308, %v1269, 0
  %v1592 = vsel %vm1308, %v1270, 0
  %v1595 = vsel %vm1308, %v1271, 0
  %v1598 = vsel %vm1308, %v1272, 0
  %v1601 = vsel %vm1308, %v1273, 0
  %v1604 = vsel %vm1308, %v1274, 0
  %v1607 = vsel %vm1308, %v1275, 0
  %v1610 = vsel %vm1308, %v1276, 0
  %v1613 = vsel %vm1308, %v1277, 0
  %v1616 = vsel %vm1308, %v1278, 0
  %v1619 = vsel %vm1308, %v1279, 0
  %v1622 = vsel %vm1308, %v1280, 0
  %v1625 = vsel %vm1308, %v1281, 0
  %v1628 = vsel %vm1308, %v1282, 0
  %v1631 = vsel %vm1308, %v1283, 0
  %v1634 = vsel %vm1308, %v1284, 0
  %v1637 = vsel %vm1308, %v1285, 0
  %v1640 = vsel %vm1308, %v1286, 0
  %v1643 = vsel %vm1308, %v1287, 0
  %v1646 = vsel %vm1308, %v1288, 0
  %v1649 = vsel %vm1308, %v1289, 0
  %v1652 = vsel %vm1308, %v1290, 0
  %v1655 = vsel %vm1308, %v1291, 0
  %v1658 = vsel %vm1308, %v1292, 0
  %v1661 = vsel %vm1308, %v1293, 0
  %v1664 = vsel %vm1308, %v1294, 0
  %v1667 = vsel %vm1308, %v1295, 0
  %v1670 = vsel %vm1308, %v1296, 0
  %v1673 = vsel %vm1308, %v1297, 0
  %v1676 = vsel %vm1308, %v1298, 0
  %v1679 = vsel %vm1308, %v1299, 0
  %v1682 = vsel %vm1308, %v1300, 0
  %v1685 = vsel %vm1308, %v1301, 0
  %v1688 = vsel %vm1308, %v1302, 0
  %v1691 = vsel %vm1308, %v1303, 0
  %1693 = vmatprep.subr.mxu0 0.0
  %1694 = vmatpush1.msra.mxu0 %v14
  %1695 = vmatprep.subr.mxu0 0.0
  %1696 = vmatpush1.msra.mxu0 %v15
  %1697 = vmatprep.subr.mxu0 0.0
  %1698 = vmatpush1.msra.mxu0 %v16
  %1699 = vmatprep.subr.mxu0 0.0
  %1700 = vmatpush1.msra.mxu0 %v17
  %1701 = vmatprep.subr.mxu0 0.0
  %1702 = vmatpush1.msra.mxu0 0.0
  %1703 = vmatprep.subr.mxu0 0.0
  %1704 = vmatpush1.msra.mxu0 0.0
  %1705 = vmatprep.subr.mxu0 0.0
  %1706 = vmatpush1.msra.mxu0 0.0
  %1707 = vmatprep.subr.mxu0 0.0
  %1708 = vmatpush1.msra.mxu0 0.0
  %1709 = vmatprep.subr.mxu0 0.0
  %1710 = vmatpush1.msra.mxu0 0.0
  %1711 = vmatprep.subr.mxu0 0.0
  %1712 = vmatpush1.msra.mxu0 0.0
  %1713 = vmatprep.subr.mxu0 0.0
  %1714 = vmatpush1.msra.mxu0 0.0
  %1715 = vmatprep.subr.mxu0 0.0
  %1716 = vmatpush1.msra.mxu0 0.0
  %1717 = vmatprep.subr.mxu0 0.0
  %1718 = vmatpush1.msra.mxu0 0.0
  %1719 = vmatprep.subr.mxu0 0.0
  %1720 = vmatpush1.msra.mxu0 0.0
  %1721 = vmatprep.subr.mxu0 0.0
  %1722 = vmatpush1.msra.mxu0 0.0
  %1723 = vmatprep.subr.mxu0 0.0
  %1724 = vmatpush1.msra.mxu0 0.0
  %1725 = vmatprep.subr.mxu0 0.0
  %1726 = vmatpush1.msra.mxu0 0.0
  %1727 = vmatprep.subr.mxu0 0.0
  %1728 = vmatpush1.msra.mxu0 0.0
  %1729 = vmatprep.subr.mxu0 0.0
  %1730 = vmatpush1.msra.mxu0 0.0
  %1731 = vmatprep.subr.mxu0 0.0
  %1732 = vmatpush1.msra.mxu0 0.0
  %1733 = vmatprep.subr.mxu0 0.0
  %1734 = vmatpush1.msra.mxu0 0.0
  %1735 = vmatprep.subr.mxu0 0.0
  %1736 = vmatpush1.msra.mxu0 0.0
  %1737 = vmatprep.subr.mxu0 0.0
  %1738 = vmatpush1.msra.mxu0 0.0
  %1739 = vmatprep.subr.mxu0 0.0
  %1740 = vmatpush1.msra.mxu0 0.0
  %1741 = vmatprep.subr.mxu0 0.0
  %1742 = vmatpush1.msra.mxu0 0.0
  %1743 = vmatprep.subr.mxu0 0.0
  %1744 = vmatpush1.msra.mxu0 0.0
  %1745 = vmatprep.subr.mxu0 0.0
  %1746 = vmatpush1.msra.mxu0 0.0
  %1747 = vmatprep.subr.mxu0 0.0
  %1748 = vmatpush1.msra.mxu0 0.0
  %1749 = vmatprep.subr.mxu0 0.0
  %1750 = vmatpush1.msra.mxu0 0.0
  %1751 = vmatprep.subr.mxu0 0.0
  %1752 = vmatpush1.msra.mxu0 0.0
  %1753 = vmatprep.subr.mxu0 0.0
  %1754 = vmatpush1.msra.mxu0 0.0
  %1755 = vmatprep.subr.mxu0 0.0
  %1756 = vmatpush1.msra.mxu0 0.0
  %1757 = vmatprep.mubr.f32.mxu0 0.0
  %1758 = vmatmul.mubr.f32.gmra.mrb[0].mxu0 %v1310
  %v1759 = vpop.f32.mrb[0].mxu0
  %v1760 = vadd.f32 %v1307, %v1759
  %v1761 = vpop.f32.mrb[0].mxu0
  %1762 = vmatprep.mubr.f32.mxu0 0.0
  %1763 = vmatmul.mubr.f32.gmra.mrb[0].mxu0 %v1313
  %v1764 = vpop.f32.mrb[0].mxu0
  %v1765 = vadd.f32 %v1307, %v1764
  %v1766 = vpop.f32.mrb[0].mxu0
  %1767 = vmatprep.mubr.f32.mxu0 0.0
  %1768 = vmatmul.mubr.f32.gmra.mrb[0].mxu0 %v1316
  %v1769 = vpop.f32.mrb[0].mxu0
  %v1770 = vadd.f32 %v1307, %v1769
  %v1771 = vpop.f32.mrb[0].mxu0
  %1772 = vmatprep.mubr.f32.mxu0 0.0
  %1773 = vmatmul.mubr.f32.gmra.mrb[0].mxu0 %v1319
  %v1774 = vpop.f32.mrb[0].mxu0
  %v1775 = vadd.f32 %v1307, %v1774
  %v1776 = vpop.f32.mrb[0].mxu0
  %1777 = vmatprep.mubr.f32.mxu0 0.0
  %1778 = vmatmul.mubr.f32.gmra.mrb[0].mxu0 %v1322
  %v1779 = vpop.f32.mrb[0].mxu0
  %v1780 = vadd.f32 %v1307, %v1779
  %v1781 = vpop.f32.mrb[0].mxu0
  %1782 = vmatprep.mubr.f32.mxu0 0.0
  %1783 = vmatmul.mubr.f32.gmra.mrb[0].mxu0 %v1325
  %v1784 = vpop.f32.mrb[0].mxu0
  %v1785 = vadd.f32 %v1307, %v1784
  %v1786 = vpop.f32.mrb[0].mxu0
  %1787 = vmatprep.mubr.f32.mxu0 0.0
  %1788 = vmatmul.mubr.f32.gmra.mrb[0].mxu0 %v1328
  %v1789 = vpop.f32.mrb[0].mxu0
  %v1790 = vadd.f32 %v1307, %v1789
  %v1791 = vpop.f32.mrb[0].mxu0
  %1792 = vmatprep.mubr.f32.mxu0 0.0
  %1793 = vmatmul.mubr.f32.gmra.mrb[0].mxu0 %v1331
  %v1794 = vpop.f32.mrb[0].mxu0
  %v1795 = vadd.f32 %v1307, %v1794
  %v1796 = vpop.f32.mrb[0].mxu0
  %1797 = vmatprep.mubr.f32.mxu0 0.0
  %1798 = vmatmul.mubr.f32.gmra.mrb[0].mxu0 %v1334
  %v1799 = vpop.f32.mrb[0].mxu0
  %v1800 = vadd.f32 %v1307, %v1799
  %v1801 = vpop.f32.mrb[0].mxu0
  %1802 = vmatprep.mubr.f32.mxu0 0.0
  %1803 = vmatmul.mubr.f32.gmra.mrb[0].mxu0 %v1337
  %v1804 = vpop.f32.mrb[0].mxu0
  %v1805 = vadd.f32 %v1307, %v1804
  %v1806 = vpop.f32.mrb[0].mxu0
  %1807 = vmatprep.mubr.f32.mxu0 0.0
  %1808 = vmatmul.mubr.f32.gmra.mrb[0].mxu0 %v1340
  %v1809 = vpop.f32.mrb[0].mxu0
  %v1810 = vadd.f32 %v1307, %v1809
  %v1811 = vpop.f32.mrb[0].mxu0
  %1812 = vmatprep.mubr.f32.mxu0 0.0
  %1813 = vmatmul.mubr.f32.gmra.mrb[0].mxu0 %v1343
  %v1814 = vpop.f32.mrb[0].mxu0
  %v1815 = vadd.f32 %v1307, %v1814
  %v1816 = vpop.f32.mrb[0].mxu0
  %1817 = vmatprep.mubr.f32.mxu0 0.0
  %1818 = vmatmul.mubr.f32.gmra.mrb[0].mxu0 %v1346
  %v1819 = vpop.f32.mrb[0].mxu0
  %v1820 = vadd.f32 %v1307, %v1819
  %v1821 = vpop.f32.mrb[0].mxu0
  %1822 = vmatprep.mubr.f32.mxu0 0.0
  %1823 = vmatmul.mubr.f32.gmra.mrb[0].mxu0 %v1349
  %v1824 = vpop.f32.mrb[0].mxu0
  %v1825 = vadd.f32 %v1307, %v1824
  %v1826 = vpop.f32.mrb[0].mxu0
  %1827 = vmatprep.mubr.f32.mxu0 0.0
  %1828 = vmatmul.mubr.f32.gmra.mrb[0].mxu0 %v1352
  %v1829 = vpop.f32.mrb[0].mxu0
  %v1830 = vadd.f32 %v1307, %v1829
  %v1831 = vpop.f32.mrb[0].mxu0
  %1832 = vmatprep.mubr.f32.mxu0 0.0
  %1833 = vmatmul.mubr.f32.gmra.mrb[0].mxu0 %v1355
  %v1834 = vpop.f32.mrb[0].mxu0
  %v1835 = vadd.f32 %v1307, %v1834
  %v1836 = vpop.f32.mrb[0].mxu0
  %1837 = vmatprep.mubr.f32.mxu0 0.0
  %1838 = vmatmul.mubr.f32.gmra.mrb[0].mxu0 %v1358
  %v1839 = vpop.f32.mrb[0].mxu0
  %v1840 = vadd.f32 %v1307, %v1839
  %v1841 = vpop.f32.mrb[0].mxu0
  %1842 = vmatprep.mubr.f32.mxu0 0.0
  %1843 = vmatmul.mubr.f32.gmra.mrb[0].mxu0 %v1361
  %v1844 = vpop.f32.mrb[0].mxu0
  %v1845 = vadd.f32 %v1307, %v1844
  %v1846 = vpop.f32.mrb[0].mxu0
  %1847 = vmatprep.mubr.f32.mxu0 0.0
  %1848 = vmatmul.mubr.f32.gmra.mrb[0].mxu0 %v1364
  %v1849 = vpop.f32.mrb[0].mxu0
  %v1850 = vadd.f32 %v1307, %v1849
  %v1851 = vpop.f32.mrb[0].mxu0
  %1852 = vmatprep.mubr.f32.mxu0 0.0
  %1853 = vmatmul.mubr.f32.gmra.mrb[0].mxu0 %v1367
  %v1854 = vpop.f32.mrb[0].mxu0
  %v1855 = vadd.f32 %v1307, %v1854
  %v1856 = vpop.f32.mrb[0].mxu0
  %1857 = vmatprep.mubr.f32.mxu0 0.0
  %1858 = vmatmul.mubr.f32.gmra.mrb[0].mxu0 %v1370
  %v1859 = vpop.f32.mrb[0].mxu0
  %v1860 = vadd.f32 %v1307, %v1859
  %v1861 = vpop.f32.mrb[0].mxu0
  %1862 = vmatprep.mubr.f32.mxu0 0.0
  %1863 = vmatmul.mubr.f32.gmra.mrb[0].mxu0 %v1373
  %v1864 = vpop.f32.mrb[0].mxu0
  %v1865 = vadd.f32 %v1307, %v1864
  %v1866 = vpop.f32.mrb[0].mxu0
  %1867 = vmatprep.mubr.f32.mxu0 0.0
  %1868 = vmatmul.mubr.f32.gmra.mrb[0].mxu0 %v1376
  %v1869 = vpop.f32.mrb[0].mxu0
  %v1870 = vadd.f32 %v1307, %v1869
  %v1871 = vpop.f32.mrb[0].mxu0
  %1872 = vmatprep.mubr.f32.mxu0 0.0
  %1873 = vmatmul.mubr.f32.gmra.mrb[0].mxu0 %v1379
  %v1874 = vpop.f32.mrb[0].mxu0
  %v1875 = vadd.f32 %v1307, %v1874
  %v1876 = vpop.f32.mrb[0].mxu0
  %1877 = vmatprep.mubr.f32.mxu0 0.0
  %1878 = vmatmul.mubr.f32.gmra.mrb[0].mxu0 %v1382
  %v1879 = vpop.f32.mrb[0].mxu0
  %v1880 = vadd.f32 %v1307, %v1879
  %v1881 = vpop.f32.mrb[0].mxu0
  %1882 = vmatprep.mubr.f32.mxu0 0.0
  %1883 = vmatmul.mubr.f32.gmra.mrb[0].mxu0 %v1385
  %v1884 = vpop.f32.mrb[0].mxu0
  %v1885 = vadd.f32 %v1307, %v1884
  %v1886 = vpop.f32.mrb[0].mxu0
  %1887 = vmatprep.mubr.f32.mxu0 0.0
  %1888 = vmatmul.mubr.f32.gmra.mrb[0].mxu0 %v1388
  %v1889 = vpop.f32.mrb[0].mxu0
  %v1890 = vadd.f32 %v1307, %v1889
  %v1891 = vpop.f32.mrb[0].mxu0
  %1892 = vmatprep.mubr.f32.mxu0 0.0
  %1893 = vmatmul.mubr.f32.gmra.mrb[0].mxu0 %v1391
  %v1894 = vpop.f32.mrb[0].mxu0
  %v1895 = vadd.f32 %v1307, %v1894
  %v1896 = vpop.f32.mrb[0].mxu0
  %1897 = vmatprep.mubr.f32.mxu0 0.0
  %1898 = vmatmul.mubr.f32.gmra.mrb[0].mxu0 %v1394
  %v1899 = vpop.f32.mrb[0].mxu0
  %v1900 = vadd.f32 %v1307, %v1899
  %v1901 = vpop.f32.mrb[0].mxu0
  %1902 = vmatprep.mubr.f32.mxu0 0.0
  %1903 = vmatmul.mubr.f32.gmra.mrb[0].mxu0 %v1397
  %v1904 = vpop.f32.mrb[0].mxu0
  %v1905 = vadd.f32 %v1307, %v1904
  %v1906 = vpop.f32.mrb[0].mxu0
  %1907 = vmatprep.mubr.f32.mxu0 0.0
  %1908 = vmatmul.mubr.f32.gmra.mrb[0].mxu0 %v1400
  %v1909 = vpop.f32.mrb[0].mxu0
  %v1910 = vadd.f32 %v1307, %v1909
  %v1911 = vpop.f32.mrb[0].mxu0
  %1912 = vmatprep.mubr.f32.mxu0 0.0
  %1913 = vmatmul.mubr.f32.gmra.mrb[0].mxu0 %v1403
  %v1914 = vpop.f32.mrb[0].mxu0
  %v1915 = vadd.f32 %v1307, %v1914
  %v1916 = vpop.f32.mrb[0].mxu0
  %1917 = vmatprep.mubr.f32.mxu0 0.0
  %1918 = vmatmul.mubr.f32.gmra.mrb[0].mxu0 %v1406
  %v1919 = vpop.f32.mrb[0].mxu0
  %v1920 = vadd.f32 %v1307, %v1919
  %v1921 = vpop.f32.mrb[0].mxu0
  %1922 = vmatprep.mubr.f32.mxu0 0.0
  %1923 = vmatmul.mubr.f32.gmra.mrb[0].mxu0 %v1409
  %v1924 = vpop.f32.mrb[0].mxu0
  %v1925 = vadd.f32 %v1307, %v1924
  %v1926 = vpop.f32.mrb[0].mxu0
  %1927 = vmatprep.mubr.f32.mxu0 0.0
  %1928 = vmatmul.mubr.f32.gmra.mrb[0].mxu0 %v1412
  %v1929 = vpop.f32.mrb[0].mxu0
  %v1930 = vadd.f32 %v1307, %v1929
  %v1931 = vpop.f32.mrb[0].mxu0
  %1932 = vmatprep.mubr.f32.mxu0 0.0
  %1933 = vmatmul.mubr.f32.gmra.mrb[0].mxu0 %v1415
  %v1934 = vpop.f32.mrb[0].mxu0
  %v1935 = vadd.f32 %v1307, %v1934
  %v1936 = vpop.f32.mrb[0].mxu0
  %1937 = vmatprep.mubr.f32.mxu0 0.0
  %1938 = vmatmul.mubr.f32.gmra.mrb[0].mxu0 %v1418
  %v1939 = vpop.f32.mrb[0].mxu0
  %v1940 = vadd.f32 %v1307, %v1939
  %v1941 = vpop.f32.mrb[0].mxu0
  %1942 = vmatprep.mubr.f32.mxu0 0.0
  %1943 = vmatmul.mubr.f32.gmra.mrb[0].mxu0 %v1421
  %v1944 = vpop.f32.mrb[0].mxu0
  %v1945 = vadd.f32 %v1307, %v1944
  %v1946 = vpop.f32.mrb[0].mxu0
  %1947 = vmatprep.mubr.f32.mxu0 0.0
  %1948 = vmatmul.mubr.f32.gmra.mrb[0].mxu0 %v1424
  %v1949 = vpop.f32.mrb[0].mxu0
  %v1950 = vadd.f32 %v1307, %v1949
  %v1951 = vpop.f32.mrb[0].mxu0
  %1952 = vmatprep.mubr.f32.mxu0 0.0
  %1953 = vmatmul.mubr.f32.gmra.mrb[0].mxu0 %v1427
  %v1954 = vpop.f32.mrb[0].mxu0
  %v1955 = vadd.f32 %v1307, %v1954
  %v1956 = vpop.f32.mrb[0].mxu0
  %1957 = vmatprep.mubr.f32.mxu0 0.0
  %1958 = vmatmul.mubr.f32.gmra.mrb[0].mxu0 %v1430
  %v1959 = vpop.f32.mrb[0].mxu0
  %v1960 = vadd.f32 %v1307, %v1959
  %v1961 = vpop.f32.mrb[0].mxu0
  %1962 = vmatprep.mubr.f32.mxu0 0.0
  %1963 = vmatmul.mubr.f32.gmra.mrb[0].mxu0 %v1433
  %v1964 = vpop.f32.mrb[0].mxu0
  %v1965 = vadd.f32 %v1307, %v1964
  %v1966 = vpop.f32.mrb[0].mxu0
  %1967 = vmatprep.mubr.f32.mxu0 0.0
  %1968 = vmatmul.mubr.f32.gmra.mrb[0].mxu0 %v1436
  %v1969 = vpop.f32.mrb[0].mxu0
  %v1970 = vadd.f32 %v1307, %v1969
  %v1971 = vpop.f32.mrb[0].mxu0
  %1972 = vmatprep.mubr.f32.mxu0 0.0
  %1973 = vmatmul.mubr.f32.gmra.mrb[0].mxu0 %v1439
  %v1974 = vpop.f32.mrb[0].mxu0
  %v1975 = vadd.f32 %v1307, %v1974
  %v1976 = vpop.f32.mrb[0].mxu0
  %1977 = vmatprep.mubr.f32.mxu0 0.0
  %1978 = vmatmul.mubr.f32.gmra.mrb[0].mxu0 %v1442
  %v1979 = vpop.f32.mrb[0].mxu0
  %v1980 = vadd.f32 %v1307, %v1979
  %v1981 = vpop.f32.mrb[0].mxu0
  %1982 = vmatprep.mubr.f32.mxu0 0.0
  %1983 = vmatmul.mubr.f32.gmra.mrb[0].mxu0 %v1445
  %v1984 = vpop.f32.mrb[0].mxu0
  %v1985 = vadd.f32 %v1307, %v1984
  %v1986 = vpop.f32.mrb[0].mxu0
  %1987 = vmatprep.mubr.f32.mxu0 0.0
  %1988 = vmatmul.mubr.f32.gmra.mrb[0].mxu0 %v1448
  %v1989 = vpop.f32.mrb[0].mxu0
  %v1990 = vadd.f32 %v1307, %v1989
  %v1991 = vpop.f32.mrb[0].mxu0
  %1992 = vmatprep.mubr.f32.mxu0 0.0
  %1993 = vmatmul.mubr.f32.gmra.mrb[0].mxu0 %v1451
  %v1994 = vpop.f32.mrb[0].mxu0
  %v1995 = vadd.f32 %v1307, %v1994
  %v1996 = vpop.f32.mrb[0].mxu0
  %1997 = vmatprep.mubr.f32.mxu0 0.0
  %1998 = vmatmul.mubr.f32.gmra.mrb[0].mxu0 %v1454
  %v1999 = vpop.f32.mrb[0].mxu0
  %v2000 = vadd.f32 %v1307, %v1999
  %v2001 = vpop.f32.mrb[0].mxu0
  %2002 = vmatprep.mubr.f32.mxu0 0.0
  %2003 = vmatmul.mubr.f32.gmra.mrb[0].mxu0 %v1457
  %v2004 = vpop.f32.mrb[0].mxu0
  %v2005 = vadd.f32 %v1307, %v2004
  %v2006 = vpop.f32.mrb[0].mxu0
  %2007 = vmatprep.mubr.f32.mxu0 0.0
  %2008 = vmatmul.mubr.f32.gmra.mrb[0].mxu0 %v1460
  %v2009 = vpop.f32.mrb[0].mxu0
  %v2010 = vadd.f32 %v1307, %v2009
  %v2011 = vpop.f32.mrb[0].mxu0
  %2012 = vmatprep.mubr.f32.mxu0 0.0
  %2013 = vmatmul.mubr.f32.gmra.mrb[0].mxu0 %v1463
  %v2014 = vpop.f32.mrb[0].mxu0
  %v2015 = vadd.f32 %v1307, %v2014
  %v2016 = vpop.f32.mrb[0].mxu0
  %2017 = vmatprep.mubr.f32.mxu0 0.0
  %2018 = vmatmul.mubr.f32.gmra.mrb[0].mxu0 %v1466
  %v2019 = vpop.f32.mrb[0].mxu0
  %v2020 = vadd.f32 %v1307, %v2019
  %v2021 = vpop.f32.mrb[0].mxu0
  %2022 = vmatprep.mubr.f32.mxu0 0.0
  %2023 = vmatmul.mubr.f32.gmra.mrb[0].mxu0 %v1469
  %v2024 = vpop.f32.mrb[0].mxu0
  %v2025 = vadd.f32 %v1307, %v2024
  %v2026 = vpop.f32.mrb[0].mxu0
  %2027 = vmatprep.mubr.f32.mxu0 0.0
  %2028 = vmatmul.mubr.f32.gmra.mrb[0].mxu0 %v1472
  %v2029 = vpop.f32.mrb[0].mxu0
  %v2030 = vadd.f32 %v1307, %v2029
  %v2031 = vpop.f32.mrb[0].mxu0
  %2032 = vmatprep.mubr.f32.mxu0 0.0
  %2033 = vmatmul.mubr.f32.gmra.mrb[0].mxu0 %v1475
  %v2034 = vpop.f32.mrb[0].mxu0
  %v2035 = vadd.f32 %v1307, %v2034
  %v2036 = vpop.f32.mrb[0].mxu0
  %2037 = vmatprep.mubr.f32.mxu0 0.0
  %2038 = vmatmul.mubr.f32.gmra.mrb[0].mxu0 %v1478
  %v2039 = vpop.f32.mrb[0].mxu0
  %v2040 = vadd.f32 %v1307, %v2039
  %v2041 = vpop.f32.mrb[0].mxu0
  %2042 = vmatprep.mubr.f32.mxu0 0.0
  %2043 = vmatmul.mubr.f32.gmra.mrb[0].mxu0 %v1481
  %v2044 = vpop.f32.mrb[0].mxu0
  %v2045 = vadd.f32 %v1307, %v2044
  %v2046 = vpop.f32.mrb[0].mxu0
  %2047 = vmatprep.mubr.f32.mxu0 0.0
  %2048 = vmatmul.mubr.f32.gmra.mrb[0].mxu0 %v1484
  %v2049 = vpop.f32.mrb[0].mxu0
  %v2050 = vadd.f32 %v1307, %v2049
  %v2051 = vpop.f32.mrb[0].mxu0
  %2052 = vmatprep.mubr.f32.mxu0 0.0
  %2053 = vmatmul.mubr.f32.gmra.mrb[0].mxu0 %v1487
  %v2054 = vpop.f32.mrb[0].mxu0
  %v2055 = vadd.f32 %v1307, %v2054
  %v2056 = vpop.f32.mrb[0].mxu0
  %2057 = vmatprep.mubr.f32.mxu0 0.0
  %2058 = vmatmul.mubr.f32.gmra.mrb[0].mxu0 %v1490
  %v2059 = vpop.f32.mrb[0].mxu0
  %v2060 = vadd.f32 %v1307, %v2059
  %v2061 = vpop.f32.mrb[0].mxu0
  %2062 = vmatprep.mubr.f32.mxu0 0.0
  %2063 = vmatmul.mubr.f32.gmra.mrb[0].mxu0 %v1493
  %v2064 = vpop.f32.mrb[0].mxu0
  %v2065 = vadd.f32 %v1307, %v2064
  %v2066 = vpop.f32.mrb[0].mxu0
  %2067 = vmatprep.mubr.f32.mxu0 0.0
  %2068 = vmatmul.mubr.f32.gmra.mrb[0].mxu0 %v1496
  %v2069 = vpop.f32.mrb[0].mxu0
  %v2070 = vadd.f32 %v1307, %v2069
  %v2071 = vpop.f32.mrb[0].mxu0
  %2072 = vmatprep.mubr.f32.mxu0 0.0
  %2073 = vmatmul.mubr.f32.gmra.mrb[0].mxu0 %v1499
  %v2074 = vpop.f32.mrb[0].mxu0
  %v2075 = vadd.f32 %v1307, %v2074
  %v2076 = vpop.f32.mrb[0].mxu0
  %2077 = vmatprep.mubr.f32.mxu0 0.0
  %2078 = vmatmul.mubr.f32.gmra.mrb[0].mxu0 %v1502
  %v2079 = vpop.f32.mrb[0].mxu0
  %v2080 = vadd.f32 %v1307, %v2079
  %v2081 = vpop.f32.mrb[0].mxu0
  %2082 = vmatprep.mubr.f32.mxu0 0.0
  %2083 = vmatmul.mubr.f32.gmra.mrb[0].mxu0 %v1505
  %v2084 = vpop.f32.mrb[0].mxu0
  %v2085 = vadd.f32 %v1307, %v2084
  %v2086 = vpop.f32.mrb[0].mxu0
  %2087 = vmatprep.mubr.f32.mxu0 0.0
  %2088 = vmatmul.mubr.f32.gmra.mrb[0].mxu0 %v1508
  %v2089 = vpop.f32.mrb[0].mxu0
  %v2090 = vadd.f32 %v1307, %v2089
  %v2091 = vpop.f32.mrb[0].mxu0
  %2092 = vmatprep.mubr.f32.mxu0 0.0
  %2093 = vmatmul.mubr.f32.gmra.mrb[0].mxu0 %v1511
  %v2094 = vpop.f32.mrb[0].mxu0
  %v2095 = vadd.f32 %v1307, %v2094
  %v2096 = vpop.f32.mrb[0].mxu0
  %2097 = vmatprep.mubr.f32.mxu0 0.0
  %2098 = vmatmul.mubr.f32.gmra.mrb[0].mxu0 %v1514
  %v2099 = vpop.f32.mrb[0].mxu0
  %v2100 = vadd.f32 %v1307, %v2099
  %v2101 = vpop.f32.mrb[0].mxu0
  %2102 = vmatprep.mubr.f32.mxu0 0.0
  %2103 = vmatmul.mubr.f32.gmra.mrb[0].mxu0 %v1517
  %v2104 = vpop.f32.mrb[0].mxu0
  %v2105 = vadd.f32 %v1307, %v2104
  %v2106 = vpop.f32.mrb[0].mxu0
  %2107 = vmatprep.mubr.f32.mxu0 0.0
  %2108 = vmatmul.mubr.f32.gmra.mrb[0].mxu0 %v1520
  %v2109 = vpop.f32.mrb[0].mxu0
  %v2110 = vadd.f32 %v1307, %v2109
  %v2111 = vpop.f32.mrb[0].mxu0
  %2112 = vmatprep.mubr.f32.mxu0 0.0
  %2113 = vmatmul.mubr.f32.gmra.mrb[0].mxu0 %v1523
  %v2114 = vpop.f32.mrb[0].mxu0
  %v2115 = vadd.f32 %v1307, %v2114
  %v2116 = vpop.f32.mrb[0].mxu0
  %2117 = vmatprep.mubr.f32.mxu0 0.0
  %2118 = vmatmul.mubr.f32.gmra.mrb[0].mxu0 %v1526
  %v2119 = vpop.f32.mrb[0].mxu0
  %v2120 = vadd.f32 %v1307, %v2119
  %v2121 = vpop.f32.mrb[0].mxu0
  %2122 = vmatprep.mubr.f32.mxu0 0.0
  %2123 = vmatmul.mubr.f32.gmra.mrb[0].mxu0 %v1529
  %v2124 = vpop.f32.mrb[0].mxu0
  %v2125 = vadd.f32 %v1307, %v2124
  %v2126 = vpop.f32.mrb[0].mxu0
  %2127 = vmatprep.mubr.f32.mxu0 0.0
  %2128 = vmatmul.mubr.f32.gmra.mrb[0].mxu0 %v1532
  %v2129 = vpop.f32.mrb[0].mxu0
  %v2130 = vadd.f32 %v1307, %v2129
  %v2131 = vpop.f32.mrb[0].mxu0
  %2132 = vmatprep.mubr.f32.mxu0 0.0
  %2133 = vmatmul.mubr.f32.gmra.mrb[0].mxu0 %v1535
  %v2134 = vpop.f32.mrb[0].mxu0
  %v2135 = vadd.f32 %v1307, %v2134
  %v2136 = vpop.f32.mrb[0].mxu0
  %2137 = vmatprep.mubr.f32.mxu0 0.0
  %2138 = vmatmul.mubr.f32.gmra.mrb[0].mxu0 %v1538
  %v2139 = vpop.f32.mrb[0].mxu0
  %v2140 = vadd.f32 %v1307, %v2139
  %v2141 = vpop.f32.mrb[0].mxu0
  %2142 = vmatprep.mubr.f32.mxu0 0.0
  %2143 = vmatmul.mubr.f32.gmra.mrb[0].mxu0 %v1541
  %v2144 = vpop.f32.mrb[0].mxu0
  %v2145 = vadd.f32 %v1307, %v2144
  %v2146 = vpop.f32.mrb[0].mxu0
  %2147 = vmatprep.mubr.f32.mxu0 0.0
  %2148 = vmatmul.mubr.f32.gmra.mrb[0].mxu0 %v1544
  %v2149 = vpop.f32.mrb[0].mxu0
  %v2150 = vadd.f32 %v1307, %v2149
  %v2151 = vpop.f32.mrb[0].mxu0
  %2152 = vmatprep.mubr.f32.mxu0 0.0
  %2153 = vmatmul.mubr.f32.gmra.mrb[0].mxu0 %v1547
  %v2154 = vpop.f32.mrb[0].mxu0
  %v2155 = vadd.f32 %v1307, %v2154
  %v2156 = vpop.f32.mrb[0].mxu0
  %2157 = vmatprep.mubr.f32.mxu0 0.0
  %2158 = vmatmul.mubr.f32.gmra.mrb[0].mxu0 %v1550
  %v2159 = vpop.f32.mrb[0].mxu0
  %v2160 = vadd.f32 %v1307, %v2159
  %v2161 = vpop.f32.mrb[0].mxu0
  %2162 = vmatprep.mubr.f32.mxu0 0.0
  %2163 = vmatmul.mubr.f32.gmra.mrb[0].mxu0 %v1553
  %v2164 = vpop.f32.mrb[0].mxu0
  %v2165 = vadd.f32 %v1307, %v2164
  %v2166 = vpop.f32.mrb[0].mxu0
  %2167 = vmatprep.mubr.f32.mxu0 0.0
  %2168 = vmatmul.mubr.f32.gmra.mrb[0].mxu0 %v1556
  %v2169 = vpop.f32.mrb[0].mxu0
  %v2170 = vadd.f32 %v1307, %v2169
  %v2171 = vpop.f32.mrb[0].mxu0
  %2172 = vmatprep.mubr.f32.mxu0 0.0
  %2173 = vmatmul.mubr.f32.gmra.mrb[0].mxu0 %v1559
  %v2174 = vpop.f32.mrb[0].mxu0
  %v2175 = vadd.f32 %v1307, %v2174
  %v2176 = vpop.f32.mrb[0].mxu0
  %2177 = vmatprep.mubr.f32.mxu0 0.0
  %2178 = vmatmul.mubr.f32.gmra.mrb[0].mxu0 %v1562
  %v2179 = vpop.f32.mrb[0].mxu0
  %v2180 = vadd.f32 %v1307, %v2179
  %v2181 = vpop.f32.mrb[0].mxu0
  %2182 = vmatprep.mubr.f32.mxu0 0.0
  %2183 = vmatmul.mubr.f32.gmra.mrb[0].mxu0 %v1565
  %v2184 = vpop.f32.mrb[0].mxu0
  %v2185 = vadd.f32 %v1307, %v2184
  %v2186 = vpop.f32.mrb[0].mxu0
  %2187 = vmatprep.mubr.f32.mxu0 0.0
  %2188 = vmatmul.mubr.f32.gmra.mrb[0].mxu0 %v1568
  %v2189 = vpop.f32.mrb[0].mxu0
  %v2190 = vadd.f32 %v1307, %v2189
  %v2191 = vpop.f32.mrb[0].mxu0
  %2192 = vmatprep.mubr.f32.mxu0 0.0
  %2193 = vmatmul.mubr.f32.gmra.mrb[0].mxu0 %v1571
  %v2194 = vpop.f32.mrb[0].mxu0
  %v2195 = vadd.f32 %v1307, %v2194
  %v2196 = vpop.f32.mrb[0].mxu0
  %2197 = vmatprep.mubr.f32.mxu0 0.0
  %2198 = vmatmul.mubr.f32.gmra.mrb[0].mxu0 %v1574
  %v2199 = vpop.f32.mrb[0].mxu0
  %v2200 = vadd.f32 %v1307, %v2199
  %v2201 = vpop.f32.mrb[0].mxu0
  %2202 = vmatprep.mubr.f32.mxu0 0.0
  %2203 = vmatmul.mubr.f32.gmra.mrb[0].mxu0 %v1577
  %v2204 = vpop.f32.mrb[0].mxu0
  %v2205 = vadd.f32 %v1307, %v2204
  %v2206 = vpop.f32.mrb[0].mxu0
  %2207 = vmatprep.mubr.f32.mxu0 0.0
  %2208 = vmatmul.mubr.f32.gmra.mrb[0].mxu0 %v1580
  %v2209 = vpop.f32.mrb[0].mxu0
  %v2210 = vadd.f32 %v1307, %v2209
  %v2211 = vpop.f32.mrb[0].mxu0
  %2212 = vmatprep.mubr.f32.mxu0 0.0
  %2213 = vmatmul.mubr.f32.gmra.mrb[0].mxu0 %v1583
  %v2214 = vpop.f32.mrb[0].mxu0
  %v2215 = vadd.f32 %v1307, %v2214
  %v2216 = vpop.f32.mrb[0].mxu0
  %2217 = vmatprep.mubr.f32.mxu0 0.0
  %2218 = vmatmul.mubr.f32.gmra.mrb[0].mxu0 %v1586
  %v2219 = vpop.f32.mrb[0].mxu0
  %v2220 = vadd.f32 %v1307, %v2219
  %v2221 = vpop.f32.mrb[0].mxu0
  %2222 = vmatprep.mubr.f32.mxu0 0.0
  %2223 = vmatmul.mubr.f32.gmra.mrb[0].mxu0 %v1589
  %v2224 = vpop.f32.mrb[0].mxu0
  %v2225 = vadd.f32 %v1307, %v2224
  %v2226 = vpop.f32.mrb[0].mxu0
  %2227 = vmatprep.mubr.f32.mxu0 0.0
  %2228 = vmatmul.mubr.f32.gmra.mrb[0].mxu0 %v1592
  %v2229 = vpop.f32.mrb[0].mxu0
  %v2230 = vadd.f32 %v1307, %v2229
  %v2231 = vpop.f32.mrb[0].mxu0
  %2232 = vmatprep.mubr.f32.mxu0 0.0
  %2233 = vmatmul.mubr.f32.gmra.mrb[0].mxu0 %v1595
  %v2234 = vpop.f32.mrb[0].mxu0
  %v2235 = vadd.f32 %v1307, %v2234
  %v2236 = vpop.f32.mrb[0].mxu0
  %2237 = vmatprep.mubr.f32.mxu0 0.0
  %2238 = vmatmul.mubr.f32.gmra.mrb[0].mxu0 %v1598
  %v2239 = vpop.f32.mrb[0].mxu0
  %v2240 = vadd.f32 %v1307, %v2239
  %v2241 = vpop.f32.mrb[0].mxu0
  %2242 = vmatprep.mubr.f32.mxu0 0.0
  %2243 = vmatmul.mubr.f32.gmra.mrb[0].mxu0 %v1601
  %v2244 = vpop.f32.mrb[0].mxu0
  %v2245 = vadd.f32 %v1307, %v2244
  %v2246 = vpop.f32.mrb[0].mxu0
  %2247 = vmatprep.mubr.f32.mxu0 0.0
  %2248 = vmatmul.mubr.f32.gmra.mrb[0].mxu0 %v1604
  %v2249 = vpop.f32.mrb[0].mxu0
  %v2250 = vadd.f32 %v1307, %v2249
  %v2251 = vpop.f32.mrb[0].mxu0
  %2252 = vmatprep.mubr.f32.mxu0 0.0
  %2253 = vmatmul.mubr.f32.gmra.mrb[0].mxu0 %v1607
  %v2254 = vpop.f32.mrb[0].mxu0
  %v2255 = vadd.f32 %v1307, %v2254
  %v2256 = vpop.f32.mrb[0].mxu0
  %2257 = vmatprep.mubr.f32.mxu0 0.0
  %2258 = vmatmul.mubr.f32.gmra.mrb[0].mxu0 %v1610
  %v2259 = vpop.f32.mrb[0].mxu0
  %v2260 = vadd.f32 %v1307, %v2259
  %v2261 = vpop.f32.mrb[0].mxu0
  %2262 = vmatprep.mubr.f32.mxu0 0.0
  %2263 = vmatmul.mubr.f32.gmra.mrb[0].mxu0 %v1613
  %v2264 = vpop.f32.mrb[0].mxu0
  %v2265 = vadd.f32 %v1307, %v2264
  %v2266 = vpop.f32.mrb[0].mxu0
  %2267 = vmatprep.mubr.f32.mxu0 0.0
  %2268 = vmatmul.mubr.f32.gmra.mrb[0].mxu0 %v1616
  %v2269 = vpop.f32.mrb[0].mxu0
  %v2270 = vadd.f32 %v1307, %v2269
  %v2271 = vpop.f32.mrb[0].mxu0
  %2272 = vmatprep.mubr.f32.mxu0 0.0
  %2273 = vmatmul.mubr.f32.gmra.mrb[0].mxu0 %v1619
  %v2274 = vpop.f32.mrb[0].mxu0
  %v2275 = vadd.f32 %v1307, %v2274
  %v2276 = vpop.f32.mrb[0].mxu0
  %2277 = vmatprep.mubr.f32.mxu0 0.0
  %2278 = vmatmul.mubr.f32.gmra.mrb[0].mxu0 %v1622
  %v2279 = vpop.f32.mrb[0].mxu0
  %v2280 = vadd.f32 %v1307, %v2279
  %v2281 = vpop.f32.mrb[0].mxu0
  %2282 = vmatprep.mubr.f32.mxu0 0.0
  %2283 = vmatmul.mubr.f32.gmra.mrb[0].mxu0 %v1625
  %v2284 = vpop.f32.mrb[0].mxu0
  %v2285 = vadd.f32 %v1307, %v2284
  %v2286 = vpop.f32.mrb[0].mxu0
  %2287 = vmatprep.mubr.f32.mxu0 0.0
  %2288 = vmatmul.mubr.f32.gmra.mrb[0].mxu0 %v1628
  %v2289 = vpop.f32.mrb[0].mxu0
  %v2290 = vadd.f32 %v1307, %v2289
  %v2291 = vpop.f32.mrb[0].mxu0
  %2292 = vmatprep.mubr.f32.mxu0 0.0
  %2293 = vmatmul.mubr.f32.gmra.mrb[0].mxu0 %v1631
  %v2294 = vpop.f32.mrb[0].mxu0
  %v2295 = vadd.f32 %v1307, %v2294
  %v2296 = vpop.f32.mrb[0].mxu0
  %2297 = vmatprep.mubr.f32.mxu0 0.0
  %2298 = vmatmul.mubr.f32.gmra.mrb[0].mxu0 %v1634
  %v2299 = vpop.f32.mrb[0].mxu0
  %v2300 = vadd.f32 %v1307, %v2299
  %v2301 = vpop.f32.mrb[0].mxu0
  %2302 = vmatprep.mubr.f32.mxu0 0.0
  %2303 = vmatmul.mubr.f32.gmra.mrb[0].mxu0 %v1637
  %v2304 = vpop.f32.mrb[0].mxu0
  %v2305 = vadd.f32 %v1307, %v2304
  %v2306 = vpop.f32.mrb[0].mxu0
  %2307 = vmatprep.mubr.f32.mxu0 0.0
  %2308 = vmatmul.mubr.f32.gmra.mrb[0].mxu0 %v1640
  %v2309 = vpop.f32.mrb[0].mxu0
  %v2310 = vadd.f32 %v1307, %v2309
  %v2311 = vpop.f32.mrb[0].mxu0
  %2312 = vmatprep.mubr.f32.mxu0 0.0
  %2313 = vmatmul.mubr.f32.gmra.mrb[0].mxu0 %v1643
  %v2314 = vpop.f32.mrb[0].mxu0
  %v2315 = vadd.f32 %v1307, %v2314
  %v2316 = vpop.f32.mrb[0].mxu0
  %2317 = vmatprep.mubr.f32.mxu0 0.0
  %2318 = vmatmul.mubr.f32.gmra.mrb[0].mxu0 %v1646
  %v2319 = vpop.f32.mrb[0].mxu0
  %v2320 = vadd.f32 %v1307, %v2319
  %v2321 = vpop.f32.mrb[0].mxu0
  %2322 = vmatprep.mubr.f32.mxu0 0.0
  %2323 = vmatmul.mubr.f32.gmra.mrb[0].mxu0 %v1649
  %v2324 = vpop.f32.mrb[0].mxu0
  %v2325 = vadd.f32 %v1307, %v2324
  %v2326 = vpop.f32.mrb[0].mxu0
  %2327 = vmatprep.mubr.f32.mxu0 0.0
  %2328 = vmatmul.mubr.f32.gmra.mrb[0].mxu0 %v1652
  %v2329 = vpop.f32.mrb[0].mxu0
  %v2330 = vadd.f32 %v1307, %v2329
  %v2331 = vpop.f32.mrb[0].mxu0
  %2332 = vmatprep.mubr.f32.mxu0 0.0
  %2333 = vmatmul.mubr.f32.gmra.mrb[0].mxu0 %v1655
  %v2334 = vpop.f32.mrb[0].mxu0
  %v2335 = vadd.f32 %v1307, %v2334
  %v2336 = vpop.f32.mrb[0].mxu0
  %2337 = vmatprep.mubr.f32.mxu0 0.0
  %2338 = vmatmul.mubr.f32.gmra.mrb[0].mxu0 %v1658
  %v2339 = vpop.f32.mrb[0].mxu0
  %v2340 = vadd.f32 %v1307, %v2339
  %v2341 = vpop.f32.mrb[0].mxu0
  %2342 = vmatprep.mubr.f32.mxu0 0.0
  %2343 = vmatmul.mubr.f32.gmra.mrb[0].mxu0 %v1661
  %v2344 = vpop.f32.mrb[0].mxu0
  %v2345 = vadd.f32 %v1307, %v2344
  %v2346 = vpop.f32.mrb[0].mxu0
  %2347 = vmatprep.mubr.f32.mxu0 0.0
  %2348 = vmatmul.mubr.f32.gmra.mrb[0].mxu0 %v1664
  %v2349 = vpop.f32.mrb[0].mxu0
  %v2350 = vadd.f32 %v1307, %v2349
  %v2351 = vpop.f32.mrb[0].mxu0
  %2352 = vmatprep.mubr.f32.mxu0 0.0
  %2353 = vmatmul.mubr.f32.gmra.mrb[0].mxu0 %v1667
  %v2354 = vpop.f32.mrb[0].mxu0
  %v2355 = vadd.f32 %v1307, %v2354
  %v2356 = vpop.f32.mrb[0].mxu0
  %2357 = vmatprep.mubr.f32.mxu0 0.0
  %2358 = vmatmul.mubr.f32.gmra.mrb[0].mxu0 %v1670
  %v2359 = vpop.f32.mrb[0].mxu0
  %v2360 = vadd.f32 %v1307, %v2359
  %v2361 = vpop.f32.mrb[0].mxu0
  %2362 = vmatprep.mubr.f32.mxu0 0.0
  %2363 = vmatmul.mubr.f32.gmra.mrb[0].mxu0 %v1673
  %v2364 = vpop.f32.mrb[0].mxu0
  %v2365 = vadd.f32 %v1307, %v2364
  %v2366 = vpop.f32.mrb[0].mxu0
  %2367 = vmatprep.mubr.f32.mxu0 0.0
  %2368 = vmatmul.mubr.f32.gmra.mrb[0].mxu0 %v1676
  %v2369 = vpop.f32.mrb[0].mxu0
  %v2370 = vadd.f32 %v1307, %v2369
  %v2371 = vpop.f32.mrb[0].mxu0
  %2372 = vmatprep.mubr.f32.mxu0 0.0
  %2373 = vmatmul.mubr.f32.gmra.mrb[0].mxu0 %v1679
  %v2374 = vpop.f32.mrb[0].mxu0
  %v2375 = vadd.f32 %v1307, %v2374
  %v2376 = vpop.f32.mrb[0].mxu0
  %2377 = vmatprep.mubr.f32.mxu0 0.0
  %2378 = vmatmul.mubr.f32.gmra.mrb[0].mxu0 %v1682
  %v2379 = vpop.f32.mrb[0].mxu0
  %v2380 = vadd.f32 %v1307, %v2379
  %v2381 = vpop.f32.mrb[0].mxu0
  %2382 = vmatprep.mubr.f32.mxu0 0.0
  %2383 = vmatmul.mubr.f32.gmra.mrb[0].mxu0 %v1685
  %v2384 = vpop.f32.mrb[0].mxu0
  %v2385 = vadd.f32 %v1307, %v2384
  %v2386 = vpop.f32.mrb[0].mxu0
  %2387 = vmatprep.mubr.f32.mxu0 0.0
  %2388 = vmatmul.mubr.f32.gmra.mrb[0].mxu0 %v1688
  %v2389 = vpop.f32.mrb[0].mxu0
  %v2390 = vadd.f32 %v1307, %v2389
  %v2391 = vpop.f32.mrb[0].mxu0
  %2392 = vmatprep.mubr.f32.mxu0 0.0
  %2393 = vmatmul.mubr.f32.gmra.mrb[0].mxu0 %v1691
  %v2394 = vpop.f32.mrb[0].mxu0
  %v2395 = vadd.f32 %v1307, %v2394
  %v2396 = vpop.f32.mrb[0].mxu0
  %2397 = vdwg.mxu0
  %v2398 = vmax.f32 %v1760, 0.0
  %v2399 = vmax.f32 %v1765, 0.0
  %v2400 = vmax.f32 %v1770, 0.0
  %v2401 = vmax.f32 %v1775, 0.0
  %v2402 = vmax.f32 %v1780, 0.0
  %v2403 = vmax.f32 %v1785, 0.0
  %v2404 = vmax.f32 %v1790, 0.0
  %v2405 = vmax.f32 %v1795, 0.0
  %v2406 = vmax.f32 %v1800, 0.0
  %v2407 = vmax.f32 %v1805, 0.0
  %v2408 = vmax.f32 %v1810, 0.0
  %v2409 = vmax.f32 %v1815, 0.0
  %v2410 = vmax.f32 %v1820, 0.0
  %v2411 = vmax.f32 %v1825, 0.0
  %v2412 = vmax.f32 %v1830, 0.0
  %v2413 = vmax.f32 %v1835, 0.0
  %v2414 = vmax.f32 %v1840, 0.0
  %v2415 = vmax.f32 %v1845, 0.0
  %v2416 = vmax.f32 %v1850, 0.0
  %v2417 = vmax.f32 %v1855, 0.0
  %v2418 = vmax.f32 %v1860, 0.0
  %v2419 = vmax.f32 %v1865, 0.0
  %v2420 = vmax.f32 %v1870, 0.0
  %v2421 = vmax.f32 %v1875, 0.0
  %v2422 = vmax.f32 %v1880, 0.0
  %v2423 = vmax.f32 %v1885, 0.0
  %v2424 = vmax.f32 %v1890, 0.0
  %v2425 = vmax.f32 %v1895, 0.0
  %v2426 = vmax.f32 %v1900, 0.0
  %v2427 = vmax.f32 %v1905, 0.0
  %v2428 = vmax.f32 %v1910, 0.0
  %v2429 = vmax.f32 %v1915, 0.0
  %v2430 = vmax.f32 %v1920, 0.0
  %v2431 = vmax.f32 %v1925, 0.0
  %v2432 = vmax.f32 %v1930, 0.0
  %v2433 = vmax.f32 %v1935, 0.0
  %v2434 = vmax.f32 %v1940, 0.0
  %v2435 = vmax.f32 %v1945, 0.0
  %v2436 = vmax.f32 %v1950, 0.0
  %v2437 = vmax.f32 %v1955, 0.0
  %v2438 = vmax.f32 %v1960, 0.0
  %v2439 = vmax.f32 %v1965, 0.0
  %v2440 = vmax.f32 %v1970, 0.0
  %v2441 = vmax.f32 %v1975, 0.0
  %v2442 = vmax.f32 %v1980, 0.0
  %v2443 = vmax.f32 %v1985, 0.0
  %v2444 = vmax.f32 %v1990, 0.0
  %v2445 = vmax.f32 %v1995, 0.0
  %v2446 = vmax.f32 %v2000, 0.0
  %v2447 = vmax.f32 %v2005, 0.0
  %v2448 = vmax.f32 %v2010, 0.0
  %v2449 = vmax.f32 %v2015, 0.0
  %v2450 = vmax.f32 %v2020, 0.0
  %v2451 = vmax.f32 %v2025, 0.0
  %v2452 = vmax.f32 %v2030, 0.0
  %v2453 = vmax.f32 %v2035, 0.0
  %v2454 = vmax.f32 %v2040, 0.0
  %v2455 = vmax.f32 %v2045, 0.0
  %v2456 = vmax.f32 %v2050, 0.0
  %v2457 = vmax.f32 %v2055, 0.0
  %v2458 = vmax.f32 %v2060, 0.0
  %v2459 = vmax.f32 %v2065, 0.0
  %v2460 = vmax.f32 %v2070, 0.0
  %v2461 = vmax.f32 %v2075, 0.0
  %v2462 = vmax.f32 %v2080, 0.0
  %v2463 = vmax.f32 %v2085, 0.0
  %v2464 = vmax.f32 %v2090, 0.0
  %v2465 = vmax.f32 %v2095, 0.0
  %v2466 = vmax.f32 %v2100, 0.0
  %v2467 = vmax.f32 %v2105, 0.0
  %v2468 = vmax.f32 %v2110, 0.0
  %v2469 = vmax.f32 %v2115, 0.0
  %v2470 = vmax.f32 %v2120, 0.0
  %v2471 = vmax.f32 %v2125, 0.0
  %v2472 = vmax.f32 %v2130, 0.0
  %v2473 = vmax.f32 %v2135, 0.0
  %v2474 = vmax.f32 %v2140, 0.0
  %v2475 = vmax.f32 %v2145, 0.0
  %v2476 = vmax.f32 %v2150, 0.0
  %v2477 = vmax.f32 %v2155, 0.0
  %v2478 = vmax.f32 %v2160, 0.0
  %v2479 = vmax.f32 %v2165, 0.0
  %v2480 = vmax.f32 %v2170, 0.0
  %v2481 = vmax.f32 %v2175, 0.0
  %v2482 = vmax.f32 %v2180, 0.0
  %v2483 = vmax.f32 %v2185, 0.0
  %v2484 = vmax.f32 %v2190, 0.0
  %v2485 = vmax.f32 %v2195, 0.0
  %v2486 = vmax.f32 %v2200, 0.0
  %v2487 = vmax.f32 %v2205, 0.0
  %v2488 = vmax.f32 %v2210, 0.0
  %v2489 = vmax.f32 %v2215, 0.0
  %v2490 = vmax.f32 %v2220, 0.0
  %v2491 = vmax.f32 %v2225, 0.0
  %v2492 = vmax.f32 %v2230, 0.0
  %v2493 = vmax.f32 %v2235, 0.0
  %v2494 = vmax.f32 %v2240, 0.0
  %v2495 = vmax.f32 %v2245, 0.0
  %v2496 = vmax.f32 %v2250, 0.0
  %v2497 = vmax.f32 %v2255, 0.0
  %v2498 = vmax.f32 %v2260, 0.0
  %v2499 = vmax.f32 %v2265, 0.0
  %v2500 = vmax.f32 %v2270, 0.0
  %v2501 = vmax.f32 %v2275, 0.0
  %v2502 = vmax.f32 %v2280, 0.0
  %v2503 = vmax.f32 %v2285, 0.0
  %v2504 = vmax.f32 %v2290, 0.0
  %v2505 = vmax.f32 %v2295, 0.0
  %v2506 = vmax.f32 %v2300, 0.0
  %v2507 = vmax.f32 %v2305, 0.0
  %v2508 = vmax.f32 %v2310, 0.0
  %v2509 = vmax.f32 %v2315, 0.0
  %v2510 = vmax.f32 %v2320, 0.0
  %v2511 = vmax.f32 %v2325, 0.0
  %v2512 = vmax.f32 %v2330, 0.0
  %v2513 = vmax.f32 %v2335, 0.0
  %v2514 = vmax.f32 %v2340, 0.0
  %v2515 = vmax.f32 %v2345, 0.0
  %v2516 = vmax.f32 %v2350, 0.0
  %v2517 = vmax.f32 %v2355, 0.0
  %v2518 = vmax.f32 %v2360, 0.0
  %v2519 = vmax.f32 %v2365, 0.0
  %v2520 = vmax.f32 %v2370, 0.0
  %v2521 = vmax.f32 %v2375, 0.0
  %v2522 = vmax.f32 %v2380, 0.0
  %v2523 = vmax.f32 %v2385, 0.0
  %v2524 = vmax.f32 %v2390, 0.0
  %v2525 = vmax.f32 %v2395, 0.0
  %v2526 = vsel %vm1308, %v2398, 0.0
  %v2527 = vsel %vm1308, %v2399, 0.0
  %v2528 = vadd.f32 %v2526, %v2527
  %v2529 = vsel %vm1308, %v2400, 0.0
  %v2530 = vadd.f32 %v2528, %v2529
  %v2531 = vsel %vm1308, %v2401, 0.0
  %v2532 = vadd.f32 %v2530, %v2531
  %v2533 = vsel %vm1308, %v2402, 0.0
  %v2534 = vadd.f32 %v2532, %v2533
  %v2535 = vsel %vm1308, %v2403, 0.0
  %v2536 = vadd.f32 %v2534, %v2535
  %v2537 = vsel %vm1308, %v2404, 0.0
  %v2538 = vadd.f32 %v2536, %v2537
  %v2539 = vsel %vm1308, %v2405, 0.0
  %v2540 = vadd.f32 %v2538, %v2539
  %v2541 = vsel %vm1308, %v2406, 0.0
  %v2542 = vadd.f32 %v2540, %v2541
  %v2543 = vsel %vm1308, %v2407, 0.0
  %v2544 = vadd.f32 %v2542, %v2543
  %v2545 = vsel %vm1308, %v2408, 0.0
  %v2546 = vadd.f32 %v2544, %v2545
  %v2547 = vsel %vm1308, %v2409, 0.0
  %v2548 = vadd.f32 %v2546, %v2547
  %v2549 = vsel %vm1308, %v2410, 0.0
  %v2550 = vadd.f32 %v2548, %v2549
  %v2551 = vsel %vm1308, %v2411, 0.0
  %v2552 = vadd.f32 %v2550, %v2551
  %v2553 = vsel %vm1308, %v2412, 0.0
  %v2554 = vadd.f32 %v2552, %v2553
  %v2555 = vsel %vm1308, %v2413, 0.0
  %v2556 = vadd.f32 %v2554, %v2555
  %v2557 = vsel %vm1308, %v2414, 0.0
  %v2558 = vadd.f32 %v2556, %v2557
  %v2559 = vsel %vm1308, %v2415, 0.0
  %v2560 = vadd.f32 %v2558, %v2559
  %v2561 = vsel %vm1308, %v2416, 0.0
  %v2562 = vadd.f32 %v2560, %v2561
  %v2563 = vsel %vm1308, %v2417, 0.0
  %v2564 = vadd.f32 %v2562, %v2563
  %v2565 = vsel %vm1308, %v2418, 0.0
  %v2566 = vadd.f32 %v2564, %v2565
  %v2567 = vsel %vm1308, %v2419, 0.0
  %v2568 = vadd.f32 %v2566, %v2567
  %v2569 = vsel %vm1308, %v2420, 0.0
  %v2570 = vadd.f32 %v2568, %v2569
  %v2571 = vsel %vm1308, %v2421, 0.0
  %v2572 = vadd.f32 %v2570, %v2571
  %v2573 = vsel %vm1308, %v2422, 0.0
  %v2574 = vadd.f32 %v2572, %v2573
  %v2575 = vsel %vm1308, %v2423, 0.0
  %v2576 = vadd.f32 %v2574, %v2575
  %v2577 = vsel %vm1308, %v2424, 0.0
  %v2578 = vadd.f32 %v2576, %v2577
  %v2579 = vsel %vm1308, %v2425, 0.0
  %v2580 = vadd.f32 %v2578, %v2579
  %v2581 = vsel %vm1308, %v2426, 0.0
  %v2582 = vadd.f32 %v2580, %v2581
  %v2583 = vsel %vm1308, %v2427, 0.0
  %v2584 = vadd.f32 %v2582, %v2583
  %v2585 = vsel %vm1308, %v2428, 0.0
  %v2586 = vadd.f32 %v2584, %v2585
  %v2587 = vsel %vm1308, %v2429, 0.0
  %v2588 = vadd.f32 %v2586, %v2587
  %v2589 = vsel %vm1308, %v2430, 0.0
  %v2590 = vadd.f32 %v2588, %v2589
  %v2591 = vsel %vm1308, %v2431, 0.0
  %v2592 = vadd.f32 %v2590, %v2591
  %v2593 = vsel %vm1308, %v2432, 0.0
  %v2594 = vadd.f32 %v2592, %v2593
  %v2595 = vsel %vm1308, %v2433, 0.0
  %v2596 = vadd.f32 %v2594, %v2595
  %v2597 = vsel %vm1308, %v2434, 0.0
  %v2598 = vadd.f32 %v2596, %v2597
  %v2599 = vsel %vm1308, %v2435, 0.0
  %v2600 = vadd.f32 %v2598, %v2599
  %v2601 = vsel %vm1308, %v2436, 0.0
  %v2602 = vadd.f32 %v2600, %v2601
  %v2603 = vsel %vm1308, %v2437, 0.0
  %v2604 = vadd.f32 %v2602, %v2603
  %v2605 = vsel %vm1308, %v2438, 0.0
  %v2606 = vadd.f32 %v2604, %v2605
  %v2607 = vsel %vm1308, %v2439, 0.0
  %v2608 = vadd.f32 %v2606, %v2607
  %v2609 = vsel %vm1308, %v2440, 0.0
  %v2610 = vadd.f32 %v2608, %v2609
  %v2611 = vsel %vm1308, %v2441, 0.0
  %v2612 = vadd.f32 %v2610, %v2611
  %v2613 = vsel %vm1308, %v2442, 0.0
  %v2614 = vadd.f32 %v2612, %v2613
  %v2615 = vsel %vm1308, %v2443, 0.0
  %v2616 = vadd.f32 %v2614, %v2615
  %v2617 = vsel %vm1308, %v2444, 0.0
  %v2618 = vadd.f32 %v2616, %v2617
  %v2619 = vsel %vm1308, %v2445, 0.0
  %v2620 = vadd.f32 %v2618, %v2619
  %v2621 = vsel %vm1308, %v2446, 0.0
  %v2622 = vadd.f32 %v2620, %v2621
  %v2623 = vsel %vm1308, %v2447, 0.0
  %v2624 = vadd.f32 %v2622, %v2623
  %v2625 = vsel %vm1308, %v2448, 0.0
  %v2626 = vadd.f32 %v2624, %v2625
  %v2627 = vsel %vm1308, %v2449, 0.0
  %v2628 = vadd.f32 %v2626, %v2627
  %v2629 = vsel %vm1308, %v2450, 0.0
  %v2630 = vadd.f32 %v2628, %v2629
  %v2631 = vsel %vm1308, %v2451, 0.0
  %v2632 = vadd.f32 %v2630, %v2631
  %v2633 = vsel %vm1308, %v2452, 0.0
  %v2634 = vadd.f32 %v2632, %v2633
  %v2635 = vsel %vm1308, %v2453, 0.0
  %v2636 = vadd.f32 %v2634, %v2635
  %v2637 = vsel %vm1308, %v2454, 0.0
  %v2638 = vadd.f32 %v2636, %v2637
  %v2639 = vsel %vm1308, %v2455, 0.0
  %v2640 = vadd.f32 %v2638, %v2639
  %v2641 = vsel %vm1308, %v2456, 0.0
  %v2642 = vadd.f32 %v2640, %v2641
  %v2643 = vsel %vm1308, %v2457, 0.0
  %v2644 = vadd.f32 %v2642, %v2643
  %v2645 = vsel %vm1308, %v2458, 0.0
  %v2646 = vadd.f32 %v2644, %v2645
  %v2647 = vsel %vm1308, %v2459, 0.0
  %v2648 = vadd.f32 %v2646, %v2647
  %v2649 = vsel %vm1308, %v2460, 0.0
  %v2650 = vadd.f32 %v2648, %v2649
  %v2651 = vsel %vm1308, %v2461, 0.0
  %v2652 = vadd.f32 %v2650, %v2651
  %v2653 = vrot.slane %v2652, 4
  %v2654 = vadd.f32 %v2652, %v2653
  %v2655 = vrot.slane %v2654, 2
  %v2656 = vadd.f32 %v2654, %v2655
  %v2657 = vrot.slane %v2656, 1
  %v2658 = vadd.f32 %v2656, %v2657
  %v2659 = vsel %vm1308, %v2462, 0.0
  %v2660 = vsel %vm1308, %v2463, 0.0
  %v2661 = vadd.f32 %v2659, %v2660
  %v2662 = vsel %vm1308, %v2464, 0.0
  %v2663 = vadd.f32 %v2661, %v2662
  %v2664 = vsel %vm1308, %v2465, 0.0
  %v2665 = vadd.f32 %v2663, %v2664
  %v2666 = vsel %vm1308, %v2466, 0.0
  %v2667 = vadd.f32 %v2665, %v2666
  %v2668 = vsel %vm1308, %v2467, 0.0
  %v2669 = vadd.f32 %v2667, %v2668
  %v2670 = vsel %vm1308, %v2468, 0.0
  %v2671 = vadd.f32 %v2669, %v2670
  %v2672 = vsel %vm1308, %v2469, 0.0
  %v2673 = vadd.f32 %v2671, %v2672
  %v2674 = vsel %vm1308, %v2470, 0.0
  %v2675 = vadd.f32 %v2673, %v2674
  %v2676 = vsel %vm1308, %v2471, 0.0
  %v2677 = vadd.f32 %v2675, %v2676
  %v2678 = vsel %vm1308, %v2472, 0.0
  %v2679 = vadd.f32 %v2677, %v2678
  %v2680 = vsel %vm1308, %v2473, 0.0
  %v2681 = vadd.f32 %v2679, %v2680
  %v2682 = vsel %vm1308, %v2474, 0.0
  %v2683 = vadd.f32 %v2681, %v2682
  %v2684 = vsel %vm1308, %v2475, 0.0
  %v2685 = vadd.f32 %v2683, %v2684
  %v2686 = vsel %vm1308, %v2476, 0.0
  %v2687 = vadd.f32 %v2685, %v2686
  %v2688 = vsel %vm1308, %v2477, 0.0
  %v2689 = vadd.f32 %v2687, %v2688
  %v2690 = vsel %vm1308, %v2478, 0.0
  %v2691 = vadd.f32 %v2689, %v2690
  %v2692 = vsel %vm1308, %v2479, 0.0
  %v2693 = vadd.f32 %v2691, %v2692
  %v2694 = vsel %vm1308, %v2480, 0.0
  %v2695 = vadd.f32 %v2693, %v2694
  %v2696 = vsel %vm1308, %v2481, 0.0
  %v2697 = vadd.f32 %v2695, %v2696
  %v2698 = vsel %vm1308, %v2482, 0.0
  %v2699 = vadd.f32 %v2697, %v2698
  %v2700 = vsel %vm1308, %v2483, 0.0
  %v2701 = vadd.f32 %v2699, %v2700
  %v2702 = vsel %vm1308, %v2484, 0.0
  %v2703 = vadd.f32 %v2701, %v2702
  %v2704 = vsel %vm1308, %v2485, 0.0
  %v2705 = vadd.f32 %v2703, %v2704
  %v2706 = vsel %vm1308, %v2486, 0.0
  %v2707 = vadd.f32 %v2705, %v2706
  %v2708 = vsel %vm1308, %v2487, 0.0
  %v2709 = vadd.f32 %v2707, %v2708
  %v2710 = vsel %vm1308, %v2488, 0.0
  %v2711 = vadd.f32 %v2709, %v2710
  %v2712 = vsel %vm1308, %v2489, 0.0
  %v2713 = vadd.f32 %v2711, %v2712
  %v2714 = vsel %vm1308, %v2490, 0.0
  %v2715 = vadd.f32 %v2713, %v2714
  %v2716 = vsel %vm1308, %v2491, 0.0
  %v2717 = vadd.f32 %v2715, %v2716
  %v2718 = vsel %vm1308, %v2492, 0.0
  %v2719 = vadd.f32 %v2717, %v2718
  %v2720 = vsel %vm1308, %v2493, 0.0
  %v2721 = vadd.f32 %v2719, %v2720
  %v2722 = vsel %vm1308, %v2494, 0.0
  %v2723 = vadd.f32 %v2721, %v2722
  %v2724 = vsel %vm1308, %v2495, 0.0
  %v2725 = vadd.f32 %v2723, %v2724
  %v2726 = vsel %vm1308, %v2496, 0.0
  %v2727 = vadd.f32 %v2725, %v2726
  %v2728 = vsel %vm1308, %v2497, 0.0
  %v2729 = vadd.f32 %v2727, %v2728
  %v2730 = vsel %vm1308, %v2498, 0.0
  %v2731 = vadd.f32 %v2729, %v2730
  %v2732 = vsel %vm1308, %v2499, 0.0
  %v2733 = vadd.f32 %v2731, %v2732
  %v2734 = vsel %vm1308, %v2500, 0.0
  %v2735 = vadd.f32 %v2733, %v2734
  %v2736 = vsel %vm1308, %v2501, 0.0
  %v2737 = vadd.f32 %v2735, %v2736
  %v2738 = vsel %vm1308, %v2502, 0.0
  %v2739 = vadd.f32 %v2737, %v2738
  %v2740 = vsel %vm1308, %v2503, 0.0
  %v2741 = vadd.f32 %v2739, %v2740
  %v2742 = vsel %vm1308, %v2504, 0.0
  %v2743 = vadd.f32 %v2741, %v2742
  %v2744 = vsel %vm1308, %v2505, 0.0
  %v2745 = vadd.f32 %v2743, %v2744
  %v2746 = vsel %vm1308, %v2506, 0.0
  %v2747 = vadd.f32 %v2745, %v2746
  %v2748 = vsel %vm1308, %v2507, 0.0
  %v2749 = vadd.f32 %v2747, %v2748
  %v2750 = vsel %vm1308, %v2508, 0.0
  %v2751 = vadd.f32 %v2749, %v2750
  %v2752 = vsel %vm1308, %v2509, 0.0
  %v2753 = vadd.f32 %v2751, %v2752
  %v2754 = vsel %vm1308, %v2510, 0.0
  %v2755 = vadd.f32 %v2753, %v2754
  %v2756 = vsel %vm1308, %v2511, 0.0
  %v2757 = vadd.f32 %v2755, %v2756
  %v2758 = vsel %vm1308, %v2512, 0.0
  %v2759 = vadd.f32 %v2757, %v2758
  %v2760 = vsel %vm1308, %v2513, 0.0
  %v2761 = vadd.f32 %v2759, %v2760
  %v2762 = vsel %vm1308, %v2514, 0.0
  %v2763 = vadd.f32 %v2761, %v2762
  %v2764 = vsel %vm1308, %v2515, 0.0
  %v2765 = vadd.f32 %v2763, %v2764
  %v2766 = vsel %vm1308, %v2516, 0.0
  %v2767 = vadd.f32 %v2765, %v2766
  %v2768 = vsel %vm1308, %v2517, 0.0
  %v2769 = vadd.f32 %v2767, %v2768
  %v2770 = vsel %vm1308, %v2518, 0.0
  %v2771 = vadd.f32 %v2769, %v2770
  %v2772 = vsel %vm1308, %v2519, 0.0
  %v2773 = vadd.f32 %v2771, %v2772
  %v2774 = vsel %vm1308, %v2520, 0.0
  %v2775 = vadd.f32 %v2773, %v2774
  %v2776 = vsel %vm1308, %v2521, 0.0
  %v2777 = vadd.f32 %v2775, %v2776
  %v2778 = vsel %vm1308, %v2522, 0.0
  %v2779 = vadd.f32 %v2777, %v2778
  %v2780 = vsel %vm1308, %v2523, 0.0
  %v2781 = vadd.f32 %v2779, %v2780
  %v2782 = vsel %vm1308, %v2524, 0.0
  %v2783 = vadd.f32 %v2781, %v2782
  %v2784 = vsel %vm1308, %v2525, 0.0
  %v2785 = vadd.f32 %v2783, %v2784
  %v2786 = vrot.slane %v2785, 4
  %v2787 = vadd.f32 %v2785, %v2786
  %v2788 = vrot.slane %v2787, 2
  %v2789 = vadd.f32 %v2787, %v2788
  %v2790 = vrot.slane %v2789, 1
  %v2791 = vadd.f32 %v2789, %v2790
  %vm2792 = vcmask 1040384
  %v2793 = vsel %vm2792, %v2658, %v2791
  %vm2794 = vcmask 254976
  %2795 = vst.msk [vmem:[%s3] sm:$0x3] %vm2794, %v2793
  // Predicated region
  $region14: #{eq3net_forward.1} parent=0 // pred_check
    _
  $region15: #{eq3net_forward.1} parent=0 // pred_check_branch
    %2797 = sbr.rel (0) target = $region17
  $region16: #{eq3net_forward.1} parent=0 // pred_region
    _
  $region17: #{eq3net_forward.1} parent=0 // pred_fallthru
    _
  // Predicated region
  $region18: #{eq3net_forward.1} parent=0 // pred_check
    _
  $region19: #{eq3net_forward.1} parent=0 // pred_check_branch
    %2799 = sbr.rel (0) target = $region21
  $region20: #{eq3net_forward.1} parent=0 // pred_region
    _
  $region21: #{eq3net_forward.1} parent=0 // pred_fallthru
    _

</llo_original>
